<compile_context>
chip_gen: v7x
topology: tpu7x:2x2x1
jax: 0.10.0
libtpu: 0.0.40
codegen_flags: <defaults>
</compile_context>

<pallas_src>
import jax
import jax.numpy as jnp
from jax.experimental import pallas as pl
from jax.experimental.pallas import tpu as pltpu


# ----------------------------------------------------------------------------
# Kernel 1: feature transform + parameter folding (runs once, monolithic).
# ----------------------------------------------------------------------------
def mvgrl_prep_kernel(x_ref, sx_ref, we_ref, wd_ref, wbil_ref, be_ref, bd_ref,
                      rhs_a_ref, rhs_s_ref, bias_a_ref, bias_s_ref, proj_ref):
    x = x_ref[...]        # (N, Fin)
    sx = sx_ref[...]      # (N, Fin)
    we = we_ref[...]      # (Fin, Fout)
    wd = wd_ref[...]      # (Fin, Fout)

    # X @ W for both views and both encoders (GCNConv does A @ (X @ W) + b).
    xe = jnp.dot(x, we, preferred_element_type=jnp.float32)    # (N, Fout)
    sxe = jnp.dot(sx, we, preferred_element_type=jnp.float32)  # (N, Fout)
    xd = jnp.dot(x, wd, preferred_element_type=jnp.float32)    # (N, Fout)
    sxd = jnp.dot(sx, wd, preferred_element_type=jnp.float32)  # (N, Fout)

    # Fused wide RHS for the propagation matmuls:  A @ [xWe | sxWe],  S @ [xWd | sxWd]
    rhs_a_ref[...] = jnp.concatenate([xe, sxe], axis=1).astype(rhs_a_ref.dtype)
    rhs_s_ref[...] = jnp.concatenate([xd, sxd], axis=1).astype(rhs_s_ref.dtype)

    # Concatenated biases matching the fused RHS layout.
    bias_a_ref[...] = jnp.concatenate([be_ref[...], be_ref[...]], axis=1)  # (1, 2F)
    bias_s_ref[...] = jnp.concatenate([bd_ref[...], bd_ref[...]], axis=1)  # (1, 2F)

    # Reduction projection (2F, 4), applied to [h_x | h_shuf]:
    #   col 0: mean over the first F cols     -> readout mean of h_x
    #   col 1: rowsum(W_bil) on first F cols  -> h_x   @ rowsum(W_bil)
    #   col 2: rowsum(W_bil) on second F cols -> h_shuf @ rowsum(W_bil)
    #   col 3: zero padding
    f = we.shape[1]
    wrow = jnp.sum(wbil_ref[...], axis=1, keepdims=True)          # (F, 1)
    mean_col = jnp.full((f, 1), 1.0 / f, dtype=jnp.float32)        # (F, 1)
    zcol = jnp.zeros((f, 1), jnp.float32)
    top = jnp.concatenate([mean_col, wrow, zcol, zcol], axis=1)    # (F, 4)
    bot = jnp.concatenate([zcol, zcol, wrow, zcol], axis=1)        # (F, 4)
    proj_ref[...] = jnp.concatenate([top, bot], axis=0)            # (2F, 4)


# ----------------------------------------------------------------------------
# Kernel 2: row-tiled propagation + PReLU + readout + collapsed Bilinear.
# ----------------------------------------------------------------------------
def mvgrl_prop_kernel(scal_ref,               # SMEM (2,) f32: [alpha, b_bil]
                      a_ref, s_ref,           # (TILE_N, N) bf16 adjacency / diffusion rows
                      rhs_a_ref, rhs_s_ref,   # (N, 2F) bf16, resident across tiles
                      bias_a_ref, bias_s_ref, # (1, 2F) f32, resident
                      proj_ref,               # (2F, 4) f32, resident
                      out_ref):               # (TILE_N, 4) f32: [sc1 sc2 sc3 sc4]
    alpha = scal_ref[0]
    b_bil = scal_ref[1]

    # Propagation: wide RHS covers both the original and shuffled views at once.
    ha = jnp.dot(a_ref[...], rhs_a_ref[...],
                 preferred_element_type=jnp.float32) + bias_a_ref[...]   # [h1 | h3]
    hs = jnp.dot(s_ref[...], rhs_s_ref[...],
                 preferred_element_type=jnp.float32) + bias_s_ref[...]   # [h2 | h4]

    # PReLU (single shared slope).
    ha = jnp.where(ha > 0, ha, alpha * ha)
    hs = jnp.where(hs > 0, hs, alpha * hs)

    # All per-node reductions (readout mean + Bilinear row-sum projections) on the MXU.
    proj = proj_ref[...]
    red_a = jnp.dot(ha, proj, preferred_element_type=jnp.float32)  # (T, 4): [m1, g1, g3, 0]
    red_s = jnp.dot(hs, proj, preferred_element_type=jnp.float32)  # (T, 4): [m2, g2, g4, 0]

    c1 = jax.nn.sigmoid(red_a[:, 0:1])   # sigmoid(mean(h1, feat))   (T, 1)
    c2 = jax.nn.sigmoid(red_s[:, 0:1])   # sigmoid(mean(h2, feat))   (T, 1)
    g1 = red_a[:, 1:2]                   # h1 @ rowsum(W_bil)
    g3 = red_a[:, 2:3]                   # h3 @ rowsum(W_bil)
    g2 = red_s[:, 1:2]                   # h2 @ rowsum(W_bil)
    g4 = red_s[:, 2:3]                   # h4 @ rowsum(W_bil)

    # Collapsed Bilinear discriminator:
    #   sc1 = Bil(h2, c1) ; sc2 = Bil(h1, c2) ; sc3 = Bil(h4, c1) ; sc4 = Bil(h3, c2)
    sc1 = c1 * g2 + b_bil
    sc2 = c2 * g1 + b_bil
    sc3 = c1 * g4 + b_bil
    sc4 = c2 * g3 + b_bil

    out_ref[...] = jnp.concatenate([sc1, sc2, sc3, sc4], axis=1)    # (T, 4)


# ----------------------------------------------------------------------------
# Wrapper
# ----------------------------------------------------------------------------
def _pick_tile(n):
    for t in (512, 256, 128):
        if n % t == 0:
            return t
    return n  # small / irregular graphs: single tile


def mvgrl_forward(x, shuf_x, a_norm, s_diff, params):
    n, _ = x.shape
    f_out = params["w_enc"].shape[1]
    f2 = 2 * f_out
    vmem = pltpu.MemorySpace.VMEM
    smem = pltpu.MemorySpace.SMEM

    # --- Kernel 1: feature transforms + folded parameters ------------------
    rhs_a, rhs_s, bias_a, bias_s, proj = pl.pallas_call(
        mvgrl_prep_kernel,
        out_shape=(
            jax.ShapeDtypeStruct((n, f2), jnp.bfloat16),
            jax.ShapeDtypeStruct((n, f2), jnp.bfloat16),
            jax.ShapeDtypeStruct((1, f2), jnp.float32),
            jax.ShapeDtypeStruct((1, f2), jnp.float32),
            jax.ShapeDtypeStruct((f2, 4), jnp.float32),
        ),
        in_specs=[pl.BlockSpec(memory_space=vmem)] * 7,
        out_specs=(pl.BlockSpec(memory_space=vmem),) * 5,
    )(
        x.astype(jnp.float32),
        shuf_x.astype(jnp.float32),
        params["w_enc"].astype(jnp.float32),
        params["w_dif"].astype(jnp.float32),
        params["w_bil"].astype(jnp.float32),
        params["b_enc"].reshape(1, f_out).astype(jnp.float32),
        params["b_dif"].reshape(1, f_out).astype(jnp.float32),
    )

    # Scalars live in SMEM.
    scal = jnp.stack([params["alpha"].astype(jnp.float32).reshape(()),
                      params["b_bil"].astype(jnp.float32).reshape(())])

    tile_n = _pick_tile(n)
    grid = (n // tile_n,)

    cost = pl.CostEstimate(
        flops=int(8 * n * n * f_out),          # two (tile, N) x (N, 2F) propagations
        transcendentals=int(2 * n),            # sigmoids
        bytes_accessed=int(2 * n * n * 2 + 2 * n * f2 * 2 + n * 4 * 4),
    )

    scores = pl.pallas_call(
        mvgrl_prop_kernel,
        out_shape=jax.ShapeDtypeStruct((n, 4), jnp.float32),
        grid=grid,
        in_specs=[
            pl.BlockSpec(memory_space=smem),                      # [alpha, b_bil]
            pl.BlockSpec((tile_n, n), lambda i: (i, 0)),          # A row block
            pl.BlockSpec((tile_n, n), lambda i: (i, 0)),          # S row block
            pl.BlockSpec((n, f2), lambda i: (0, 0)),              # rhs_a (resident)
            pl.BlockSpec((n, f2), lambda i: (0, 0)),              # rhs_s (resident)
            pl.BlockSpec((1, f2), lambda i: (0, 0)),              # bias_a
            pl.BlockSpec((1, f2), lambda i: (0, 0)),              # bias_s
            pl.BlockSpec((f2, 4), lambda i: (0, 0)),              # proj
        ],
        out_specs=pl.BlockSpec((tile_n, 4), lambda i: (i, 0)),
        compiler_params=pltpu.CompilerParams(
            dimension_semantics=("parallel",),          # v7x: split row tiles across TCs
            vmem_limit_bytes=48 * 1024 * 1024),         # stays under v7x's 64 MiB physical
        cost_estimate=cost,
    )(
        scal,
        a_norm.astype(jnp.bfloat16),
        s_diff.astype(jnp.bfloat16),
        rhs_a, rhs_s, bias_a, bias_s, proj,
    )

    # torch.cat((sc1, sc2, sc3, sc4)).flatten(): scores[:, k] == sc_{k+1}
    return scores.T.reshape(-1)   # (4N,) tiny reorder done in the wrapper


def build_gcn_norm_adj(edge_index, num_nodes):
    # Dense D^{-1/2} (A + I) D^{-1/2}  (PyG gcn_norm, add_remaining_self_loops)
    # TODO(synk): sparse scatter-based message passing not expressed in Pallas;
    # densified here (glue) so the propagation becomes a VMEM matmul.
    a = jnp.zeros((num_nodes, num_nodes), jnp.float32)
    a = a.at[edge_index[1], edge_index[0]].set(1.0)
    a = jnp.maximum(a, jnp.eye(num_nodes, dtype=jnp.float32))  # self loops only if missing
    deg = a.sum(axis=1)
    d_inv = jnp.where(deg > 0, 1.0 / jnp.sqrt(deg), 0.0)
    return d_inv[:, None] * a * d_inv[None, :]


if __name__ == "__main__":
    N, F_IN, F_OUT = 256, 16, 32   # N multiple of 128 -> exercises the row-tile grid

    key = jax.random.PRNGKey(0)
    keys = jax.random.split(key, 8)

    # Node features and shuffled (row-permuted) features.
    x = jax.random.normal(keys[0], (N, F_IN), jnp.float32)
    shuf_x = x[::-1]  # deterministic node-feature shuffle

    # data.edge_index: ring graph, both directions.
    src = jnp.arange(N)
    dst = (src + 1) % N
    edge_index = jnp.stack(
        [jnp.concatenate([src, dst]), jnp.concatenate([dst, src])], axis=0)
    a_norm = build_gcn_norm_adj(edge_index, N)

    # diff.edge_index / edge_weight: dense PPR-like diffusion matrix
    # (diffusion_encoder uses normalize=False, weights consumed as-is).
    s_raw = jax.random.uniform(keys[1], (N, N), jnp.float32)
    s_diff = s_raw / s_raw.sum(axis=1, keepdims=True)

    params = {
        "w_enc": 0.1 * jax.random.normal(keys[2], (F_IN, F_OUT), jnp.float32),
        "b_enc": 0.1 * jax.random.normal(keys[3], (F_OUT,), jnp.float32),
        "w_dif": 0.1 * jax.random.normal(keys[4], (F_IN, F_OUT), jnp.float32),
        "b_dif": 0.1 * jax.random.normal(keys[5], (F_OUT,), jnp.float32),
        "alpha": jnp.array(0.25, jnp.float32),             # nn.PReLU() default
        "w_bil": 0.1 * jax.random.normal(keys[6], (F_OUT, F_OUT), jnp.float32),
        "b_bil": 0.1 * jax.random.normal(keys[7], (), jnp.float32),
    }

    logits = mvgrl_forward(x, shuf_x, a_norm, s_diff, params)
    logits = jax.block_until_ready(logits)

    assert logits.shape == (4 * N,), logits.shape
    assert jnp.all(jnp.isfinite(logits))
    print("KERNEL_OK")
</pallas_src>

<mosaic_0001>
module attributes {stable_mosaic.version = 11 : i64} {
  func.func @mvgrl_prep_kernel(%arg0: memref<256x16xf32, #tpu.memory_space<vmem>>, %arg1: memref<256x16xf32, #tpu.memory_space<vmem>>, %arg2: memref<16x32xf32, #tpu.memory_space<vmem>>, %arg3: memref<16x32xf32, #tpu.memory_space<vmem>>, %arg4: memref<32x32xf32, #tpu.memory_space<vmem>>, %arg5: memref<1x32xf32, #tpu.memory_space<vmem>>, %arg6: memref<1x32xf32, #tpu.memory_space<vmem>>, %arg7: memref<256x64xbf16, #tpu.memory_space<vmem>>, %arg8: memref<256x64xbf16, #tpu.memory_space<vmem>>, %arg9: memref<1x64xf32, #tpu.memory_space<vmem>>, %arg10: memref<1x64xf32, #tpu.memory_space<vmem>>, %arg11: memref<64x4xf32, #tpu.memory_space<vmem>>) attributes {dimension_semantics = [], scalar_prefetch = 0 : i64, scratch_operands = 0 : i64, tpu.core_type = #tpu.core_type<tc>} {
    %c0 = arith.constant 0 : index
    %c0_0 = arith.constant 0 : index
    %0 = vector.load %arg0[%c0, %c0_0] : memref<256x16xf32, #tpu.memory_space<vmem>>, vector<256x16xf32>
    %c0_1 = arith.constant 0 : index
    %c0_2 = arith.constant 0 : index
    %1 = vector.load %arg1[%c0_1, %c0_2] : memref<256x16xf32, #tpu.memory_space<vmem>>, vector<256x16xf32>
    %c0_3 = arith.constant 0 : index
    %c0_4 = arith.constant 0 : index
    %2 = vector.load %arg2[%c0_3, %c0_4] : memref<16x32xf32, #tpu.memory_space<vmem>>, vector<16x32xf32>
    %c0_5 = arith.constant 0 : index
    %c0_6 = arith.constant 0 : index
    %3 = vector.load %arg3[%c0_5, %c0_6] : memref<16x32xf32, #tpu.memory_space<vmem>>, vector<16x32xf32>
    %cst = arith.constant dense<0.000000e+00> : vector<256x32xf32>
    %4 = tpu.matmul %0, %2, %cst {dimension_numbers = #tpu.dot_dimension_numbers<[1], [0], [0], [1], [0, 0, 1, 1], [], []>} : vector<256x16xf32>, vector<16x32xf32>, vector<256x32xf32> -> vector<256x32xf32>
    %cst_7 = arith.constant dense<0.000000e+00> : vector<256x32xf32>
    %5 = tpu.matmul %1, %2, %cst_7 {dimension_numbers = #tpu.dot_dimension_numbers<[1], [0], [0], [1], [0, 0, 1, 1], [], []>} : vector<256x16xf32>, vector<16x32xf32>, vector<256x32xf32> -> vector<256x32xf32>
    %cst_8 = arith.constant dense<0.000000e+00> : vector<256x32xf32>
    %6 = tpu.matmul %0, %3, %cst_8 {dimension_numbers = #tpu.dot_dimension_numbers<[1], [0], [0], [1], [0, 0, 1, 1], [], []>} : vector<256x16xf32>, vector<16x32xf32>, vector<256x32xf32> -> vector<256x32xf32>
    %cst_9 = arith.constant dense<0.000000e+00> : vector<256x32xf32>
    %7 = tpu.matmul %1, %3, %cst_9 {dimension_numbers = #tpu.dot_dimension_numbers<[1], [0], [0], [1], [0, 0, 1, 1], [], []>} : vector<256x16xf32>, vector<16x32xf32>, vector<256x32xf32> -> vector<256x32xf32>
    %8 = tpu.concatenate %4, %5 in 1 : vector<256x32xf32>, vector<256x32xf32> -> vector<256x64xf32>
    %9 = arith.truncf %8 : vector<256x64xf32> to vector<256x64xbf16>
    %c0_10 = arith.constant 0 : index
    %c0_11 = arith.constant 0 : index
    %10 = vector.load %arg7[%c0_10, %c0_11] : memref<256x64xbf16, #tpu.memory_space<vmem>>, vector<256x64xbf16>
    tpu.vector_store %arg7[%c0_10, %c0_11], %9 {strides = array<i32>} : memref<256x64xbf16, #tpu.memory_space<vmem>>, vector<256x64xbf16>,
    %11 = tpu.concatenate %6, %7 in 1 : vector<256x32xf32>, vector<256x32xf32> -> vector<256x64xf32>
    %12 = arith.truncf %11 : vector<256x64xf32> to vector<256x64xbf16>
    %c0_12 = arith.constant 0 : index
    %c0_13 = arith.constant 0 : index
    %13 = vector.load %arg8[%c0_12, %c0_13] : memref<256x64xbf16, #tpu.memory_space<vmem>>, vector<256x64xbf16>
    tpu.vector_store %arg8[%c0_12, %c0_13], %12 {strides = array<i32>} : memref<256x64xbf16, #tpu.memory_space<vmem>>, vector<256x64xbf16>,
    %c0_14 = arith.constant 0 : index
    %c0_15 = arith.constant 0 : index
    %14 = vector.load %arg5[%c0_14, %c0_15] : memref<1x32xf32, #tpu.memory_space<vmem>>, vector<1x32xf32>
    %c0_16 = arith.constant 0 : index
    %c0_17 = arith.constant 0 : index
    %15 = vector.load %arg5[%c0_16, %c0_17] : memref<1x32xf32, #tpu.memory_space<vmem>>, vector<1x32xf32>
    %16 = tpu.concatenate %14, %15 in 1 : vector<1x32xf32>, vector<1x32xf32> -> vector<1x64xf32>
    %c0_18 = arith.constant 0 : index
    %c0_19 = arith.constant 0 : index
    %17 = vector.load %arg9[%c0_18, %c0_19] : memref<1x64xf32, #tpu.memory_space<vmem>>, vector<1x64xf32>
    tpu.vector_store %arg9[%c0_18, %c0_19], %16 {strides = array<i32>} : memref<1x64xf32, #tpu.memory_space<vmem>>, vector<1x64xf32>,
    %c0_20 = arith.constant 0 : index
    %c0_21 = arith.constant 0 : index
    %18 = vector.load %arg6[%c0_20, %c0_21] : memref<1x32xf32, #tpu.memory_space<vmem>>, vector<1x32xf32>
    %c0_22 = arith.constant 0 : index
    %c0_23 = arith.constant 0 : index
    %19 = vector.load %arg6[%c0_22, %c0_23] : memref<1x32xf32, #tpu.memory_space<vmem>>, vector<1x32xf32>
    %20 = tpu.concatenate %18, %19 in 1 : vector<1x32xf32>, vector<1x32xf32> -> vector<1x64xf32>
    %c0_24 = arith.constant 0 : index
    %c0_25 = arith.constant 0 : index
    %21 = vector.load %arg10[%c0_24, %c0_25] : memref<1x64xf32, #tpu.memory_space<vmem>>, vector<1x64xf32>
    tpu.vector_store %arg10[%c0_24, %c0_25], %20 {strides = array<i32>} : memref<1x64xf32, #tpu.memory_space<vmem>>, vector<1x64xf32>,
    %c0_26 = arith.constant 0 : index
    %c0_27 = arith.constant 0 : index
    %22 = vector.load %arg4[%c0_26, %c0_27] : memref<32x32xf32, #tpu.memory_space<vmem>>, vector<32x32xf32>
    %cst_28 = arith.constant dense<0.000000e+00> : vector<32xf32>
    %23 = vector.multi_reduction <add>, %22, %cst_28 [1] : vector<32x32xf32> to vector<32xf32>
    %24 = vector.shape_cast %23 : vector<32xf32> to vector<32x1xf32>
    %cst_29 = arith.constant 3.125000e-02 : f32
    %25 = vector.broadcast %cst_29 : f32 to vector<32x1xf32>
    %cst_30 = arith.constant 0.000000e+00 : f32
    %26 = vector.broadcast %cst_30 : f32 to vector<32x1xf32>
    %27 = tpu.concatenate %25, %24, %26, %26 in 1 : vector<32x1xf32>, vector<32x1xf32>, vector<32x1xf32>, vector<32x1xf32> -> vector<32x4xf32>
    %28 = tpu.concatenate %26, %26, %24, %26 in 1 : vector<32x1xf32>, vector<32x1xf32>, vector<32x1xf32>, vector<32x1xf32> -> vector<32x4xf32>
    %29 = tpu.concatenate %27, %28 in 0 : vector<32x4xf32>, vector<32x4xf32> -> vector<64x4xf32>
    %c0_31 = arith.constant 0 : index
    %c0_32 = arith.constant 0 : index
    %30 = vector.load %arg11[%c0_31, %c0_32] : memref<64x4xf32, #tpu.memory_space<vmem>>, vector<64x4xf32>
    tpu.vector_store %arg11[%c0_31, %c0_32], %29 {strides = array<i32>} : memref<64x4xf32, #tpu.memory_space<vmem>>, vector<64x4xf32>,
    return
  }
}

</mosaic_0001>

<llo_original>
// kernel: tpu_custom_call.1
$region0: #{tpu_custom_call.1}
  #allocation0 [shape = 'u32[]', space=smem, size = 0x4, offset = 0x4, fixed_abs, tag = 'smem constant byte address 0x4 - core index']
  #allocation1 [shape = 'u32[144,128]{1,0:T(1,128)}', space=vmem, size = 0x12000, scoped, tag = 'internal scratch']
  %s0 = inlined_call_operand.vmem [shape: f32[256,16], index: 0, kind: input, shape index: {}]
  %s1 = inlined_call_operand.vmem [shape: f32[256,16], index: 1, kind: input, shape index: {}]
  %s2 = inlined_call_operand.vmem [shape: f32[16,32], index: 2, kind: input, shape index: {}]
  %s3 = inlined_call_operand.vmem [shape: f32[16,32], index: 3, kind: input, shape index: {}]
  %s4 = inlined_call_operand.vmem [shape: f32[32,32], index: 4, kind: input, shape index: {}]
  %s5 = inlined_call_operand.vmem [shape: f32[1,32], index: 5, kind: input, shape index: {}]
  %s6 = inlined_call_operand.vmem [shape: f32[1,32], index: 6, kind: input, shape index: {}]
  %s7 = inlined_call_operand.vmem [shape: bf16[256,64], index: 7, kind: output, shape index: {0}]
  %s8 = inlined_call_operand.vmem [shape: bf16[256,64], index: 8, kind: output, shape index: {1}]
  %s9 = inlined_call_operand.hbm [shape: f32[1,64], index: 9, kind: output, shape index: {2}]
  %s10 = inlined_call_operand.hbm [shape: f32[1,64], index: 10, kind: output, shape index: {3}]
  %s11 = inlined_call_operand.vmem [shape: f32[64,4], index: 11, kind: output, shape index: {4}]
  %12 = xla_tuple %s7, %s8, %s9, %s10, %s11
  %s13 = sld [smem:[#allocation0]]
  $region70: #{tpu_custom_call.1} parent=0
    _
  %s15 = ssub.s32 1, %s13
  %s16 = scalar_select 0, %s15, %s13
  $region1: #{tpu_custom_call.1} parent=0
    #allocation2 [shape = 'u8[512]{0}', space=vmem, size = 0x400, scoped, tag = 'output window, operand 2, single buffered']
    #allocation3 [shape = 's32[1]{0}', space=sflag, size = 0x4, scoped, tag = 'scoped memory for tpu_custom_call.1']
    #allocation4 [shape = 'u8[512]{0}', space=vmem, size = 0x400, scoped, tag = 'output window, operand 3, single buffered']
    #allocation5 [shape = 's32[1]{0}', space=sflag, size = 0x4, scoped, tag = 'scoped memory for tpu_custom_call.1']
    %17 = vsyncpa [#allocation3], 0
    %18 = vsyncpa [#allocation5], 0
    // Predicated region
    $region2: #{tpu_custom_call.1} parent=1 // pred_check
      _
    $region3: #{tpu_custom_call.1} parent=1 // pred_check_branch
      %20 = sbr.rel (0) target = $region5
    $region4: #{tpu_custom_call.1} parent=1 // pred_region
      _
    $region5: #{tpu_custom_call.1} parent=1 // pred_fallthru
      _
    // Predicated region
    $region6: #{tpu_custom_call.1} parent=1 // pred_check
      _
    $region7: #{tpu_custom_call.1} parent=1 // pred_check_branch
      %22 = sbr.rel (0) target = $region9
    $region8: #{tpu_custom_call.1} parent=1 // pred_region
      _
    $region9: #{tpu_custom_call.1} parent=1 // pred_fallthru
      _
    // Predicated region
    $region10: #{tpu_custom_call.1} parent=1 // pred_check
      _
    $region11: #{tpu_custom_call.1} parent=1 // pred_check_branch
      %24 = sbr.rel (0) target = $region13
    $region12: #{tpu_custom_call.1} parent=1 // pred_region
      _
    $region13: #{tpu_custom_call.1} parent=1 // pred_fallthru
      _
    // Predicated region
    $region14: #{tpu_custom_call.1} parent=1 // pred_check
      _
    $region15: #{tpu_custom_call.1} parent=1 // pred_check_branch
      %26 = sbr.rel (0) target = $region17
    $region16: #{tpu_custom_call.1} parent=1 // pred_region
      _
    $region17: #{tpu_custom_call.1} parent=1 // pred_fallthru
      _
    // Predicated region
    $region18: #{tpu_custom_call.1} parent=1 // pred_check
      _
    $region19: #{tpu_custom_call.1} parent=1 // pred_check_branch
      %28 = sbr.rel (0) target = $region21
    $region20: #{tpu_custom_call.1} parent=1 // pred_region
      _
    $region21: #{tpu_custom_call.1} parent=1 // pred_fallthru
      _
    // Predicated region
    $region22: #{tpu_custom_call.1} parent=1 // pred_check
      _
    $region23: #{tpu_custom_call.1} parent=1 // pred_check_branch
      %30 = sbr.rel (0) target = $region25
    $region24: #{tpu_custom_call.1} parent=1 // pred_region
      _
    $region25: #{tpu_custom_call.1} parent=1 // pred_fallthru
      _
    // Predicated region
    $region26: #{tpu_custom_call.1} parent=1 // pred_check
      _
    $region27: #{tpu_custom_call.1} parent=1 // pred_check_branch
      %32 = sbr.rel (0) target = $region29
    $region28: #{tpu_custom_call.1} parent=1 // pred_region
      _
    $region29: #{tpu_custom_call.1} parent=1 // pred_fallthru
      _
    %v33 = vld [vmem:[%s0] sm:$0xff]
    %v34 = vld [vmem:[%s0 + $0x8] sm:$0xff]
    %v35 = vld [vmem:[%s0 + $0x10] sm:$0xff]
    %v36 = vld [vmem:[%s0 + $0x18] sm:$0xff]
    %v37 = vld [vmem:[%s0 + $0x20] sm:$0xff]
    %v38 = vld [vmem:[%s0 + $0x28] sm:$0xff]
    %v39 = vld [vmem:[%s0 + $0x30] sm:$0xff]
    %v40 = vld [vmem:[%s0 + $0x38] sm:$0xff]
    %v41 = vld [vmem:[%s0 + $0x40] sm:$0xff]
    %v42 = vld [vmem:[%s0 + $0x48] sm:$0xff]
    %v43 = vld [vmem:[%s0 + $0x50] sm:$0xff]
    %v44 = vld [vmem:[%s0 + $0x58] sm:$0xff]
    %v45 = vld [vmem:[%s0 + $0x60] sm:$0xff]
    %v46 = vld [vmem:[%s0 + $0x68] sm:$0xff]
    %v47 = vld [vmem:[%s0 + $0x70] sm:$0xff]
    %v48 = vld [vmem:[%s0 + $0x78] sm:$0xff]
    %v49 = vld [vmem:[%s0 + $0x80] sm:$0xff]
    %v50 = vld [vmem:[%s0 + $0x88] sm:$0xff]
    %v51 = vld [vmem:[%s0 + $0x90] sm:$0xff]
    %v52 = vld [vmem:[%s0 + $0x98] sm:$0xff]
    %v53 = vld [vmem:[%s0 + $0xa0] sm:$0xff]
    %v54 = vld [vmem:[%s0 + $0xa8] sm:$0xff]
    %v55 = vld [vmem:[%s0 + $0xb0] sm:$0xff]
    %v56 = vld [vmem:[%s0 + $0xb8] sm:$0xff]
    %v57 = vld [vmem:[%s0 + $0xc0] sm:$0xff]
    %v58 = vld [vmem:[%s0 + $0xc8] sm:$0xff]
    %v59 = vld [vmem:[%s0 + $0xd0] sm:$0xff]
    %v60 = vld [vmem:[%s0 + $0xd8] sm:$0xff]
    %v61 = vld [vmem:[%s0 + $0xe0] sm:$0xff]
    %v62 = vld [vmem:[%s0 + $0xe8] sm:$0xff]
    %v63 = vld [vmem:[%s0 + $0xf0] sm:$0xff]
    %v64 = vld [vmem:[%s0 + $0xf8] sm:$0xff]
    %v65 = vld [vmem:[%s1] sm:$0xff]
    %v66 = vld [vmem:[%s1 + $0x8] sm:$0xff]
    %v67 = vld [vmem:[%s1 + $0x10] sm:$0xff]
    %v68 = vld [vmem:[%s1 + $0x18] sm:$0xff]
    %v69 = vld [vmem:[%s1 + $0x20] sm:$0xff]
    %v70 = vld [vmem:[%s1 + $0x28] sm:$0xff]
    %v71 = vld [vmem:[%s1 + $0x30] sm:$0xff]
    %v72 = vld [vmem:[%s1 + $0x38] sm:$0xff]
    %v73 = vld [vmem:[%s1 + $0x40] sm:$0xff]
    %v74 = vld [vmem:[%s1 + $0x48] sm:$0xff]
    %v75 = vld [vmem:[%s1 + $0x50] sm:$0xff]
    %v76 = vld [vmem:[%s1 + $0x58] sm:$0xff]
    %v77 = vld [vmem:[%s1 + $0x60] sm:$0xff]
    %v78 = vld [vmem:[%s1 + $0x68] sm:$0xff]
    %v79 = vld [vmem:[%s1 + $0x70] sm:$0xff]
    %v80 = vld [vmem:[%s1 + $0x78] sm:$0xff]
    %v81 = vld [vmem:[%s1 + $0x80] sm:$0xff]
    %v82 = vld [vmem:[%s1 + $0x88] sm:$0xff]
    %v83 = vld [vmem:[%s1 + $0x90] sm:$0xff]
    %v84 = vld [vmem:[%s1 + $0x98] sm:$0xff]
    %v85 = vld [vmem:[%s1 + $0xa0] sm:$0xff]
    %v86 = vld [vmem:[%s1 + $0xa8] sm:$0xff]
    %v87 = vld [vmem:[%s1 + $0xb0] sm:$0xff]
    %v88 = vld [vmem:[%s1 + $0xb8] sm:$0xff]
    %v89 = vld [vmem:[%s1 + $0xc0] sm:$0xff]
    %v90 = vld [vmem:[%s1 + $0xc8] sm:$0xff]
    %v91 = vld [vmem:[%s1 + $0xd0] sm:$0xff]
    %v92 = vld [vmem:[%s1 + $0xd8] sm:$0xff]
    %v93 = vld [vmem:[%s1 + $0xe0] sm:$0xff]
    %v94 = vld [vmem:[%s1 + $0xe8] sm:$0xff]
    %v95 = vld [vmem:[%s1 + $0xf0] sm:$0xff]
    %v96 = vld [vmem:[%s1 + $0xf8] sm:$0xff]
    %v97 = vld [vmem:[%s2] sm:$0xff]
    %v98 = vld [vmem:[%s2 + $0x8] sm:$0xff]
    %v99 = vld [vmem:[%s3] sm:$0xff]
    %v100 = vld [vmem:[%s3 + $0x8] sm:$0xff]
    %vm101 = vcmask 130048
    %v103 = vsel %vm101, %v33, 0
    %v106 = vsel %vm101, %v34, 0
    %v109 = vsel %vm101, %v35, 0
    %v112 = vsel %vm101, %v36, 0
    %v115 = vsel %vm101, %v37, 0
    %v118 = vsel %vm101, %v38, 0
    %v121 = vsel %vm101, %v39, 0
    %v124 = vsel %vm101, %v40, 0
    %v127 = vsel %vm101, %v41, 0
    %v130 = vsel %vm101, %v42, 0
    %v133 = vsel %vm101, %v43, 0
    %v136 = vsel %vm101, %v44, 0
    %v139 = vsel %vm101, %v45, 0
    %v142 = vsel %vm101, %v46, 0
    %v145 = vsel %vm101, %v47, 0
    %v148 = vsel %vm101, %v48, 0
    %v151 = vsel %vm101, %v49, 0
    %v154 = vsel %vm101, %v50, 0
    %v157 = vsel %vm101, %v51, 0
    %v160 = vsel %vm101, %v52, 0
    %v163 = vsel %vm101, %v53, 0
    %v166 = vsel %vm101, %v54, 0
    %v169 = vsel %vm101, %v55, 0
    %v172 = vsel %vm101, %v56, 0
    %v175 = vsel %vm101, %v57, 0
    %v178 = vsel %vm101, %v58, 0
    %v181 = vsel %vm101, %v59, 0
    %v184 = vsel %vm101, %v60, 0
    %v187 = vsel %vm101, %v61, 0
    %v190 = vsel %vm101, %v62, 0
    %v193 = vsel %vm101, %v63, 0
    %v196 = vsel %vm101, %v64, 0
    %198 = vmatprep.subr.mxu0 0.0
    %199 = vmatpush1.msra.mxu0 %v97
    %200 = vmatprep.subr.mxu0 0.0
    %201 = vmatpush1.msra.mxu0 %v98
    %202 = vmatprep.subr.mxu0 0.0
    %203 = vmatpush1.msra.mxu0 0.0
    %204 = vmatprep.subr.mxu0 0.0
    %205 = vmatpush1.msra.mxu0 0.0
    %206 = vmatprep.subr.mxu0 0.0
    %207 = vmatpush1.msra.mxu0 0.0
    %208 = vmatprep.subr.mxu0 0.0
    %209 = vmatpush1.msra.mxu0 0.0
    %210 = vmatprep.subr.mxu0 0.0
    %211 = vmatpush1.msra.mxu0 0.0
    %212 = vmatprep.subr.mxu0 0.0
    %213 = vmatpush1.msra.mxu0 0.0
    %214 = vmatprep.subr.mxu0 0.0
    %215 = vmatpush1.msra.mxu0 0.0
    %216 = vmatprep.subr.mxu0 0.0
    %217 = vmatpush1.msra.mxu0 0.0
    %218 = vmatprep.subr.mxu0 0.0
    %219 = vmatpush1.msra.mxu0 0.0
    %220 = vmatprep.subr.mxu0 0.0
    %221 = vmatpush1.msra.mxu0 0.0
    %222 = vmatprep.subr.mxu0 0.0
    %223 = vmatpush1.msra.mxu0 0.0
    %224 = vmatprep.subr.mxu0 0.0
    %225 = vmatpush1.msra.mxu0 0.0
    %226 = vmatprep.subr.mxu0 0.0
    %227 = vmatpush1.msra.mxu0 0.0
    %228 = vmatprep.subr.mxu0 0.0
    %229 = vmatpush1.msra.mxu0 0.0
    %230 = vmatprep.subr.mxu0 0.0
    %231 = vmatpush1.msra.mxu0 0.0
    %232 = vmatprep.subr.mxu0 0.0
    %233 = vmatpush1.msra.mxu0 0.0
    %234 = vmatprep.subr.mxu0 0.0
    %235 = vmatpush1.msra.mxu0 0.0
    %236 = vmatprep.subr.mxu0 0.0
    %237 = vmatpush1.msra.mxu0 0.0
    %238 = vmatprep.subr.mxu0 0.0
    %239 = vmatpush1.msra.mxu0 0.0
    %240 = vmatprep.subr.mxu0 0.0
    %241 = vmatpush1.msra.mxu0 0.0
    %242 = vmatprep.subr.mxu0 0.0
    %243 = vmatpush1.msra.mxu0 0.0
    %244 = vmatprep.subr.mxu0 0.0
    %245 = vmatpush1.msra.mxu0 0.0
    %246 = vmatprep.subr.mxu0 0.0
    %247 = vmatpush1.msra.mxu0 0.0
    %248 = vmatprep.subr.mxu0 0.0
    %249 = vmatpush1.msra.mxu0 0.0
    %250 = vmatprep.subr.mxu0 0.0
    %251 = vmatpush1.msra.mxu0 0.0
    %252 = vmatprep.subr.mxu0 0.0
    %253 = vmatpush1.msra.mxu0 0.0
    %254 = vmatprep.subr.mxu0 0.0
    %255 = vmatpush1.msra.mxu0 0.0
    %256 = vmatprep.subr.mxu0 0.0
    %257 = vmatpush1.msra.mxu0 0.0
    %258 = vmatprep.subr.mxu0 0.0
    %259 = vmatpush1.msra.mxu0 0.0
    %260 = vmatprep.subr.mxu0 0.0
    %261 = vmatpush1.msra.mxu0 0.0
    %262 = vmatprep.mubr.f32.mxu0 0.0
    %263 = vmatmul.mubr.f32.gmra.mrb[0].mxu0 %v103
    %v264 = vpop.f32.mrb[0].mxu0
    %v265 = vadd.f32 0.0, %v264
    %v266 = vpop.f32.mrb[0].mxu0
    %267 = vmatprep.mubr.f32.mxu0 0.0
    %268 = vmatmul.mubr.f32.gmra.mrb[0].mxu0 %v106
    %v269 = vpop.f32.mrb[0].mxu0
    %v270 = vadd.f32 0.0, %v269
    %v271 = vpop.f32.mrb[0].mxu0
    %272 = vmatprep.mubr.f32.mxu0 0.0
    %273 = vmatmul.mubr.f32.gmra.mrb[0].mxu0 %v109
    %v274 = vpop.f32.mrb[0].mxu0
    %v275 = vadd.f32 0.0, %v274
    %v276 = vpop.f32.mrb[0].mxu0
    %277 = vmatprep.mubr.f32.mxu0 0.0
    %278 = vmatmul.mubr.f32.gmra.mrb[0].mxu0 %v112
    %v279 = vpop.f32.mrb[0].mxu0
    %v280 = vadd.f32 0.0, %v279
    %v281 = vpop.f32.mrb[0].mxu0
    %282 = vmatprep.mubr.f32.mxu0 0.0
    %283 = vmatmul.mubr.f32.gmra.mrb[0].mxu0 %v115
    %v284 = vpop.f32.mrb[0].mxu0
    %v285 = vadd.f32 0.0, %v284
    %v286 = vpop.f32.mrb[0].mxu0
    %287 = vmatprep.mubr.f32.mxu0 0.0
    %288 = vmatmul.mubr.f32.gmra.mrb[0].mxu0 %v118
    %v289 = vpop.f32.mrb[0].mxu0
    %v290 = vadd.f32 0.0, %v289
    %v291 = vpop.f32.mrb[0].mxu0
    %292 = vmatprep.mubr.f32.mxu0 0.0
    %293 = vmatmul.mubr.f32.gmra.mrb[0].mxu0 %v121
    %v294 = vpop.f32.mrb[0].mxu0
    %v295 = vadd.f32 0.0, %v294
    %v296 = vpop.f32.mrb[0].mxu0
    %297 = vmatprep.mubr.f32.mxu0 0.0
    %298 = vmatmul.mubr.f32.gmra.mrb[0].mxu0 %v124
    %v299 = vpop.f32.mrb[0].mxu0
    %v300 = vadd.f32 0.0, %v299
    %v301 = vpop.f32.mrb[0].mxu0
    %302 = vmatprep.mubr.f32.mxu0 0.0
    %303 = vmatmul.mubr.f32.gmra.mrb[0].mxu0 %v127
    %v304 = vpop.f32.mrb[0].mxu0
    %v305 = vadd.f32 0.0, %v304
    %v306 = vpop.f32.mrb[0].mxu0
    %307 = vmatprep.mubr.f32.mxu0 0.0
    %308 = vmatmul.mubr.f32.gmra.mrb[0].mxu0 %v130
    %v309 = vpop.f32.mrb[0].mxu0
    %v310 = vadd.f32 0.0, %v309
    %v311 = vpop.f32.mrb[0].mxu0
    %312 = vmatprep.mubr.f32.mxu0 0.0
    %313 = vmatmul.mubr.f32.gmra.mrb[0].mxu0 %v133
    %v314 = vpop.f32.mrb[0].mxu0
    %v315 = vadd.f32 0.0, %v314
    %v316 = vpop.f32.mrb[0].mxu0
    %317 = vmatprep.mubr.f32.mxu0 0.0
    %318 = vmatmul.mubr.f32.gmra.mrb[0].mxu0 %v136
    %v319 = vpop.f32.mrb[0].mxu0
    %v320 = vadd.f32 0.0, %v319
    %v321 = vpop.f32.mrb[0].mxu0
    %322 = vmatprep.mubr.f32.mxu0 0.0
    %323 = vmatmul.mubr.f32.gmra.mrb[0].mxu0 %v139
    %v324 = vpop.f32.mrb[0].mxu0
    %v325 = vadd.f32 0.0, %v324
    %v326 = vpop.f32.mrb[0].mxu0
    %327 = vmatprep.mubr.f32.mxu0 0.0
    %328 = vmatmul.mubr.f32.gmra.mrb[0].mxu0 %v142
    %v329 = vpop.f32.mrb[0].mxu0
    %v330 = vadd.f32 0.0, %v329
    %v331 = vpop.f32.mrb[0].mxu0
    %332 = vmatprep.mubr.f32.mxu0 0.0
    %333 = vmatmul.mubr.f32.gmra.mrb[0].mxu0 %v145
    %v334 = vpop.f32.mrb[0].mxu0
    %v335 = vadd.f32 0.0, %v334
    %v336 = vpop.f32.mrb[0].mxu0
    %337 = vmatprep.mubr.f32.mxu0 0.0
    %338 = vmatmul.mubr.f32.gmra.mrb[0].mxu0 %v148
    %v339 = vpop.f32.mrb[0].mxu0
    %v340 = vadd.f32 0.0, %v339
    %v341 = vpop.f32.mrb[0].mxu0
    %342 = vmatprep.mubr.f32.mxu0 0.0
    %343 = vmatmul.mubr.f32.gmra.mrb[0].mxu0 %v151
    %v344 = vpop.f32.mrb[0].mxu0
    %v345 = vadd.f32 0.0, %v344
    %v346 = vpop.f32.mrb[0].mxu0
    %347 = vmatprep.mubr.f32.mxu0 0.0
    %348 = vmatmul.mubr.f32.gmra.mrb[0].mxu0 %v154
    %v349 = vpop.f32.mrb[0].mxu0
    %v350 = vadd.f32 0.0, %v349
    %v351 = vpop.f32.mrb[0].mxu0
    %352 = vmatprep.mubr.f32.mxu0 0.0
    %353 = vmatmul.mubr.f32.gmra.mrb[0].mxu0 %v157
    %v354 = vpop.f32.mrb[0].mxu0
    %v355 = vadd.f32 0.0, %v354
    %v356 = vpop.f32.mrb[0].mxu0
    %357 = vmatprep.mubr.f32.mxu0 0.0
    %358 = vmatmul.mubr.f32.gmra.mrb[0].mxu0 %v160
    %v359 = vpop.f32.mrb[0].mxu0
    %v360 = vadd.f32 0.0, %v359
    %v361 = vpop.f32.mrb[0].mxu0
    %362 = vmatprep.mubr.f32.mxu0 0.0
    %363 = vmatmul.mubr.f32.gmra.mrb[0].mxu0 %v163
    %v364 = vpop.f32.mrb[0].mxu0
    %v365 = vadd.f32 0.0, %v364
    %v366 = vpop.f32.mrb[0].mxu0
    %367 = vmatprep.mubr.f32.mxu0 0.0
    %368 = vmatmul.mubr.f32.gmra.mrb[0].mxu0 %v166
    %v369 = vpop.f32.mrb[0].mxu0
    %v370 = vadd.f32 0.0, %v369
    %v371 = vpop.f32.mrb[0].mxu0
    %372 = vmatprep.mubr.f32.mxu0 0.0
    %373 = vmatmul.mubr.f32.gmra.mrb[0].mxu0 %v169
    %v374 = vpop.f32.mrb[0].mxu0
    %v375 = vadd.f32 0.0, %v374
    %v376 = vpop.f32.mrb[0].mxu0
    %377 = vmatprep.mubr.f32.mxu0 0.0
    %378 = vmatmul.mubr.f32.gmra.mrb[0].mxu0 %v172
    %v379 = vpop.f32.mrb[0].mxu0
    %v380 = vadd.f32 0.0, %v379
    %v381 = vpop.f32.mrb[0].mxu0
    %382 = vmatprep.mubr.f32.mxu0 0.0
    %383 = vmatmul.mubr.f32.gmra.mrb[0].mxu0 %v175
    %v384 = vpop.f32.mrb[0].mxu0
    %v385 = vadd.f32 0.0, %v384
    %v386 = vpop.f32.mrb[0].mxu0
    %387 = vmatprep.mubr.f32.mxu0 0.0
    %388 = vmatmul.mubr.f32.gmra.mrb[0].mxu0 %v178
    %v389 = vpop.f32.mrb[0].mxu0
    %v390 = vadd.f32 0.0, %v389
    %v391 = vpop.f32.mrb[0].mxu0
    %392 = vmatprep.mubr.f32.mxu0 0.0
    %393 = vmatmul.mubr.f32.gmra.mrb[0].mxu0 %v181
    %v394 = vpop.f32.mrb[0].mxu0
    %v395 = vadd.f32 0.0, %v394
    %v396 = vpop.f32.mrb[0].mxu0
    %397 = vmatprep.mubr.f32.mxu0 0.0
    %398 = vmatmul.mubr.f32.gmra.mrb[0].mxu0 %v184
    %v399 = vpop.f32.mrb[0].mxu0
    %v400 = vadd.f32 0.0, %v399
    %v401 = vpop.f32.mrb[0].mxu0
    %402 = vmatprep.mubr.f32.mxu0 0.0
    %403 = vmatmul.mubr.f32.gmra.mrb[0].mxu0 %v187
    %v404 = vpop.f32.mrb[0].mxu0
    %v405 = vadd.f32 0.0, %v404
    %v406 = vpop.f32.mrb[0].mxu0
    %407 = vmatprep.mubr.f32.mxu0 0.0
    %408 = vmatmul.mubr.f32.gmra.mrb[0].mxu0 %v190
    %v409 = vpop.f32.mrb[0].mxu0
    %v410 = vadd.f32 0.0, %v409
    %v411 = vpop.f32.mrb[0].mxu0
    %412 = vmatprep.mubr.f32.mxu0 0.0
    %413 = vmatmul.mubr.f32.gmra.mrb[0].mxu0 %v193
    %v414 = vpop.f32.mrb[0].mxu0
    %v415 = vadd.f32 0.0, %v414
    %v416 = vpop.f32.mrb[0].mxu0
    %417 = vmatprep.mubr.f32.mxu0 0.0
    %418 = vmatmul.mubr.f32.gmra.mrb[0].mxu0 %v196
    %v419 = vpop.f32.mrb[0].mxu0
    %v420 = vadd.f32 0.0, %v419
    %v421 = vpop.f32.mrb[0].mxu0
    %422 = vdwg.mxu0
    %v424 = vsel %vm101, %v65, 0
    %v427 = vsel %vm101, %v66, 0
    %v430 = vsel %vm101, %v67, 0
    %v433 = vsel %vm101, %v68, 0
    %v436 = vsel %vm101, %v69, 0
    %v439 = vsel %vm101, %v70, 0
    %v442 = vsel %vm101, %v71, 0
    %v445 = vsel %vm101, %v72, 0
    %v448 = vsel %vm101, %v73, 0
    %v451 = vsel %vm101, %v74, 0
    %v454 = vsel %vm101, %v75, 0
    %v457 = vsel %vm101, %v76, 0
    %v460 = vsel %vm101, %v77, 0
    %v463 = vsel %vm101, %v78, 0
    %v466 = vsel %vm101, %v79, 0
    %v469 = vsel %vm101, %v80, 0
    %v472 = vsel %vm101, %v81, 0
    %v475 = vsel %vm101, %v82, 0
    %v478 = vsel %vm101, %v83, 0
    %v481 = vsel %vm101, %v84, 0
    %v484 = vsel %vm101, %v85, 0
    %v487 = vsel %vm101, %v86, 0
    %v490 = vsel %vm101, %v87, 0
    %v493 = vsel %vm101, %v88, 0
    %v496 = vsel %vm101, %v89, 0
    %v499 = vsel %vm101, %v90, 0
    %v502 = vsel %vm101, %v91, 0
    %v505 = vsel %vm101, %v92, 0
    %v508 = vsel %vm101, %v93, 0
    %v511 = vsel %vm101, %v94, 0
    %v514 = vsel %vm101, %v95, 0
    %v517 = vsel %vm101, %v96, 0
    %519 = vmatprep.subr.mxu0 0.0
    %520 = vmatpush1.msra.mxu0 %v97
    %521 = vmatprep.subr.mxu0 0.0
    %522 = vmatpush1.msra.mxu0 %v98
    %523 = vmatprep.subr.mxu0 0.0
    %524 = vmatpush1.msra.mxu0 0.0
    %525 = vmatprep.subr.mxu0 0.0
    %526 = vmatpush1.msra.mxu0 0.0
    %527 = vmatprep.subr.mxu0 0.0
    %528 = vmatpush1.msra.mxu0 0.0
    %529 = vmatprep.subr.mxu0 0.0
    %530 = vmatpush1.msra.mxu0 0.0
    %531 = vmatprep.subr.mxu0 0.0
    %532 = vmatpush1.msra.mxu0 0.0
    %533 = vmatprep.subr.mxu0 0.0
    %534 = vmatpush1.msra.mxu0 0.0
    %535 = vmatprep.subr.mxu0 0.0
    %536 = vmatpush1.msra.mxu0 0.0
    %537 = vmatprep.subr.mxu0 0.0
    %538 = vmatpush1.msra.mxu0 0.0
    %539 = vmatprep.subr.mxu0 0.0
    %540 = vmatpush1.msra.mxu0 0.0
    %541 = vmatprep.subr.mxu0 0.0
    %542 = vmatpush1.msra.mxu0 0.0
    %543 = vmatprep.subr.mxu0 0.0
    %544 = vmatpush1.msra.mxu0 0.0
    %545 = vmatprep.subr.mxu0 0.0
    %546 = vmatpush1.msra.mxu0 0.0
    %547 = vmatprep.subr.mxu0 0.0
    %548 = vmatpush1.msra.mxu0 0.0
    %549 = vmatprep.subr.mxu0 0.0
    %550 = vmatpush1.msra.mxu0 0.0
    %551 = vmatprep.subr.mxu0 0.0
    %552 = vmatpush1.msra.mxu0 0.0
    %553 = vmatprep.subr.mxu0 0.0
    %554 = vmatpush1.msra.mxu0 0.0
    %555 = vmatprep.subr.mxu0 0.0
    %556 = vmatpush1.msra.mxu0 0.0
    %557 = vmatprep.subr.mxu0 0.0
    %558 = vmatpush1.msra.mxu0 0.0
    %559 = vmatprep.subr.mxu0 0.0
    %560 = vmatpush1.msra.mxu0 0.0
    %561 = vmatprep.subr.mxu0 0.0
    %562 = vmatpush1.msra.mxu0 0.0
    %563 = vmatprep.subr.mxu0 0.0
    %564 = vmatpush1.msra.mxu0 0.0
    %565 = vmatprep.subr.mxu0 0.0
    %566 = vmatpush1.msra.mxu0 0.0
    %567 = vmatprep.subr.mxu0 0.0
    %568 = vmatpush1.msra.mxu0 0.0
    %569 = vmatprep.subr.mxu0 0.0
    %570 = vmatpush1.msra.mxu0 0.0
    %571 = vmatprep.subr.mxu0 0.0
    %572 = vmatpush1.msra.mxu0 0.0
    %573 = vmatprep.subr.mxu0 0.0
    %574 = vmatpush1.msra.mxu0 0.0
    %575 = vmatprep.subr.mxu0 0.0
    %576 = vmatpush1.msra.mxu0 0.0
    %577 = vmatprep.subr.mxu0 0.0
    %578 = vmatpush1.msra.mxu0 0.0
    %579 = vmatprep.subr.mxu0 0.0
    %580 = vmatpush1.msra.mxu0 0.0
    %581 = vmatprep.subr.mxu0 0.0
    %582 = vmatpush1.msra.mxu0 0.0
    %583 = vmatprep.mubr.f32.mxu0 0.0
    %584 = vmatmul.mubr.f32.gmra.mrb[0].mxu0 %v424
    %v585 = vpop.f32.mrb[0].mxu0
    %v586 = vadd.f32 0.0, %v585
    %v587 = vpop.f32.mrb[0].mxu0
    %588 = vmatprep.mubr.f32.mxu0 0.0
    %589 = vmatmul.mubr.f32.gmra.mrb[0].mxu0 %v427
    %v590 = vpop.f32.mrb[0].mxu0
    %v591 = vadd.f32 0.0, %v590
    %v592 = vpop.f32.mrb[0].mxu0
    %593 = vmatprep.mubr.f32.mxu0 0.0
    %594 = vmatmul.mubr.f32.gmra.mrb[0].mxu0 %v430
    %v595 = vpop.f32.mrb[0].mxu0
    %v596 = vadd.f32 0.0, %v595
    %v597 = vpop.f32.mrb[0].mxu0
    %598 = vmatprep.mubr.f32.mxu0 0.0
    %599 = vmatmul.mubr.f32.gmra.mrb[0].mxu0 %v433
    %v600 = vpop.f32.mrb[0].mxu0
    %v601 = vadd.f32 0.0, %v600
    %v602 = vpop.f32.mrb[0].mxu0
    %603 = vmatprep.mubr.f32.mxu0 0.0
    %604 = vmatmul.mubr.f32.gmra.mrb[0].mxu0 %v436
    %v605 = vpop.f32.mrb[0].mxu0
    %v606 = vadd.f32 0.0, %v605
    %v607 = vpop.f32.mrb[0].mxu0
    %608 = vmatprep.mubr.f32.mxu0 0.0
    %609 = vmatmul.mubr.f32.gmra.mrb[0].mxu0 %v439
    %v610 = vpop.f32.mrb[0].mxu0
    %v611 = vadd.f32 0.0, %v610
    %v612 = vpop.f32.mrb[0].mxu0
    %613 = vmatprep.mubr.f32.mxu0 0.0
    %614 = vmatmul.mubr.f32.gmra.mrb[0].mxu0 %v442
    %v615 = vpop.f32.mrb[0].mxu0
    %v616 = vadd.f32 0.0, %v615
    %v617 = vpop.f32.mrb[0].mxu0
    %618 = vmatprep.mubr.f32.mxu0 0.0
    %619 = vmatmul.mubr.f32.gmra.mrb[0].mxu0 %v445
    %v620 = vpop.f32.mrb[0].mxu0
    %v621 = vadd.f32 0.0, %v620
    %v622 = vpop.f32.mrb[0].mxu0
    %623 = vmatprep.mubr.f32.mxu0 0.0
    %624 = vmatmul.mubr.f32.gmra.mrb[0].mxu0 %v448
    %v625 = vpop.f32.mrb[0].mxu0
    %v626 = vadd.f32 0.0, %v625
    %v627 = vpop.f32.mrb[0].mxu0
    %628 = vmatprep.mubr.f32.mxu0 0.0
    %629 = vmatmul.mubr.f32.gmra.mrb[0].mxu0 %v451
    %v630 = vpop.f32.mrb[0].mxu0
    %v631 = vadd.f32 0.0, %v630
    %v632 = vpop.f32.mrb[0].mxu0
    %633 = vmatprep.mubr.f32.mxu0 0.0
    %634 = vmatmul.mubr.f32.gmra.mrb[0].mxu0 %v454
    %v635 = vpop.f32.mrb[0].mxu0
    %v636 = vadd.f32 0.0, %v635
    %v637 = vpop.f32.mrb[0].mxu0
    %638 = vmatprep.mubr.f32.mxu0 0.0
    %639 = vmatmul.mubr.f32.gmra.mrb[0].mxu0 %v457
    %v640 = vpop.f32.mrb[0].mxu0
    %v641 = vadd.f32 0.0, %v640
    %v642 = vpop.f32.mrb[0].mxu0
    %643 = vmatprep.mubr.f32.mxu0 0.0
    %644 = vmatmul.mubr.f32.gmra.mrb[0].mxu0 %v460
    %v645 = vpop.f32.mrb[0].mxu0
    %v646 = vadd.f32 0.0, %v645
    %v647 = vpop.f32.mrb[0].mxu0
    %648 = vmatprep.mubr.f32.mxu0 0.0
    %649 = vmatmul.mubr.f32.gmra.mrb[0].mxu0 %v463
    %v650 = vpop.f32.mrb[0].mxu0
    %v651 = vadd.f32 0.0, %v650
    %v652 = vpop.f32.mrb[0].mxu0
    %653 = vmatprep.mubr.f32.mxu0 0.0
    %654 = vmatmul.mubr.f32.gmra.mrb[0].mxu0 %v466
    %v655 = vpop.f32.mrb[0].mxu0
    %v656 = vadd.f32 0.0, %v655
    %v657 = vpop.f32.mrb[0].mxu0
    %658 = vmatprep.mubr.f32.mxu0 0.0
    %659 = vmatmul.mubr.f32.gmra.mrb[0].mxu0 %v469
    %v660 = vpop.f32.mrb[0].mxu0
    %v661 = vadd.f32 0.0, %v660
    %v662 = vpop.f32.mrb[0].mxu0
    %663 = vmatprep.mubr.f32.mxu0 0.0
    %664 = vmatmul.mubr.f32.gmra.mrb[0].mxu0 %v472
    %v665 = vpop.f32.mrb[0].mxu0
    %v666 = vadd.f32 0.0, %v665
    %v667 = vpop.f32.mrb[0].mxu0
    %668 = vmatprep.mubr.f32.mxu0 0.0
    %669 = vmatmul.mubr.f32.gmra.mrb[0].mxu0 %v475
    %v670 = vpop.f32.mrb[0].mxu0
    %v671 = vadd.f32 0.0, %v670
    %v672 = vpop.f32.mrb[0].mxu0
    %673 = vmatprep.mubr.f32.mxu0 0.0
    %674 = vmatmul.mubr.f32.gmra.mrb[0].mxu0 %v478
    %v675 = vpop.f32.mrb[0].mxu0
    %v676 = vadd.f32 0.0, %v675
    %v677 = vpop.f32.mrb[0].mxu0
    %678 = vmatprep.mubr.f32.mxu0 0.0
    %679 = vmatmul.mubr.f32.gmra.mrb[0].mxu0 %v481
    %v680 = vpop.f32.mrb[0].mxu0
    %v681 = vadd.f32 0.0, %v680
    %v682 = vpop.f32.mrb[0].mxu0
    %683 = vmatprep.mubr.f32.mxu0 0.0
    %684 = vmatmul.mubr.f32.gmra.mrb[0].mxu0 %v484
    %v685 = vpop.f32.mrb[0].mxu0
    %v686 = vadd.f32 0.0, %v685
    %v687 = vpop.f32.mrb[0].mxu0
    %688 = vmatprep.mubr.f32.mxu0 0.0
    %689 = vmatmul.mubr.f32.gmra.mrb[0].mxu0 %v487
    %v690 = vpop.f32.mrb[0].mxu0
    %v691 = vadd.f32 0.0, %v690
    %v692 = vpop.f32.mrb[0].mxu0
    %693 = vmatprep.mubr.f32.mxu0 0.0
    %694 = vmatmul.mubr.f32.gmra.mrb[0].mxu0 %v490
    %v695 = vpop.f32.mrb[0].mxu0
    %v696 = vadd.f32 0.0, %v695
    %v697 = vpop.f32.mrb[0].mxu0
    %698 = vmatprep.mubr.f32.mxu0 0.0
    %699 = vmatmul.mubr.f32.gmra.mrb[0].mxu0 %v493
    %v700 = vpop.f32.mrb[0].mxu0
    %v701 = vadd.f32 0.0, %v700
    %v702 = vpop.f32.mrb[0].mxu0
    %703 = vmatprep.mubr.f32.mxu0 0.0
    %704 = vmatmul.mubr.f32.gmra.mrb[0].mxu0 %v496
    %v705 = vpop.f32.mrb[0].mxu0
    %v706 = vadd.f32 0.0, %v705
    %v707 = vpop.f32.mrb[0].mxu0
    %708 = vmatprep.mubr.f32.mxu0 0.0
    %709 = vmatmul.mubr.f32.gmra.mrb[0].mxu0 %v499
    %v710 = vpop.f32.mrb[0].mxu0
    %v711 = vadd.f32 0.0, %v710
    %v712 = vpop.f32.mrb[0].mxu0
    %713 = vmatprep.mubr.f32.mxu0 0.0
    %714 = vmatmul.mubr.f32.gmra.mrb[0].mxu0 %v502
    %v715 = vpop.f32.mrb[0].mxu0
    %v716 = vadd.f32 0.0, %v715
    %v717 = vpop.f32.mrb[0].mxu0
    %718 = vmatprep.mubr.f32.mxu0 0.0
    %719 = vmatmul.mubr.f32.gmra.mrb[0].mxu0 %v505
    %v720 = vpop.f32.mrb[0].mxu0
    %v721 = vadd.f32 0.0, %v720
    %v722 = vpop.f32.mrb[0].mxu0
    %723 = vmatprep.mubr.f32.mxu0 0.0
    %724 = vmatmul.mubr.f32.gmra.mrb[0].mxu0 %v508
    %v725 = vpop.f32.mrb[0].mxu0
    %v726 = vadd.f32 0.0, %v725
    %v727 = vpop.f32.mrb[0].mxu0
    %728 = vmatprep.mubr.f32.mxu0 0.0
    %729 = vmatmul.mubr.f32.gmra.mrb[0].mxu0 %v511
    %v730 = vpop.f32.mrb[0].mxu0
    %v731 = vadd.f32 0.0, %v730
    %v732 = vpop.f32.mrb[0].mxu0
    %733 = vmatprep.mubr.f32.mxu0 0.0
    %734 = vmatmul.mubr.f32.gmra.mrb[0].mxu0 %v514
    %v735 = vpop.f32.mrb[0].mxu0
    %v736 = vadd.f32 0.0, %v735
    %v737 = vpop.f32.mrb[0].mxu0
    %738 = vmatprep.mubr.f32.mxu0 0.0
    %739 = vmatmul.mubr.f32.gmra.mrb[0].mxu0 %v517
    %v740 = vpop.f32.mrb[0].mxu0
    %v741 = vadd.f32 0.0, %v740
    %v742 = vpop.f32.mrb[0].mxu0
    %743 = vdwg.mxu0
    %744 = vmatprep.subr.mxu0 0.0
    %745 = vmatpush1.msra.mxu0 %v99
    %746 = vmatprep.subr.mxu0 0.0
    %747 = vmatpush1.msra.mxu0 %v100
    %748 = vmatprep.subr.mxu0 0.0
    %749 = vmatpush1.msra.mxu0 0.0
    %750 = vmatprep.subr.mxu0 0.0
    %751 = vmatpush1.msra.mxu0 0.0
    %752 = vmatprep.subr.mxu0 0.0
    %753 = vmatpush1.msra.mxu0 0.0
    %754 = vmatprep.subr.mxu0 0.0
    %755 = vmatpush1.msra.mxu0 0.0
    %756 = vmatprep.subr.mxu0 0.0
    %757 = vmatpush1.msra.mxu0 0.0
    %758 = vmatprep.subr.mxu0 0.0
    %759 = vmatpush1.msra.mxu0 0.0
    %760 = vmatprep.subr.mxu0 0.0
    %761 = vmatpush1.msra.mxu0 0.0
    %762 = vmatprep.subr.mxu0 0.0
    %763 = vmatpush1.msra.mxu0 0.0
    %764 = vmatprep.subr.mxu0 0.0
    %765 = vmatpush1.msra.mxu0 0.0
    %766 = vmatprep.subr.mxu0 0.0
    %767 = vmatpush1.msra.mxu0 0.0
    %768 = vmatprep.subr.mxu0 0.0
    %769 = vmatpush1.msra.mxu0 0.0
    %770 = vmatprep.subr.mxu0 0.0
    %771 = vmatpush1.msra.mxu0 0.0
    %772 = vmatprep.subr.mxu0 0.0
    %773 = vmatpush1.msra.mxu0 0.0
    %774 = vmatprep.subr.mxu0 0.0
    %775 = vmatpush1.msra.mxu0 0.0
    %776 = vmatprep.subr.mxu0 0.0
    %777 = vmatpush1.msra.mxu0 0.0
    %778 = vmatprep.subr.mxu0 0.0
    %779 = vmatpush1.msra.mxu0 0.0
    %780 = vmatprep.subr.mxu0 0.0
    %781 = vmatpush1.msra.mxu0 0.0
    %782 = vmatprep.subr.mxu0 0.0
    %783 = vmatpush1.msra.mxu0 0.0
    %784 = vmatprep.subr.mxu0 0.0
    %785 = vmatpush1.msra.mxu0 0.0
    %786 = vmatprep.subr.mxu0 0.0
    %787 = vmatpush1.msra.mxu0 0.0
    %788 = vmatprep.subr.mxu0 0.0
    %789 = vmatpush1.msra.mxu0 0.0
    %790 = vmatprep.subr.mxu0 0.0
    %791 = vmatpush1.msra.mxu0 0.0
    %792 = vmatprep.subr.mxu0 0.0
    %793 = vmatpush1.msra.mxu0 0.0
    %794 = vmatprep.subr.mxu0 0.0
    %795 = vmatpush1.msra.mxu0 0.0
    %796 = vmatprep.subr.mxu0 0.0
    %797 = vmatpush1.msra.mxu0 0.0
    %798 = vmatprep.subr.mxu0 0.0
    %799 = vmatpush1.msra.mxu0 0.0
    %800 = vmatprep.subr.mxu0 0.0
    %801 = vmatpush1.msra.mxu0 0.0
    %802 = vmatprep.subr.mxu0 0.0
    %803 = vmatpush1.msra.mxu0 0.0
    %804 = vmatprep.subr.mxu0 0.0
    %805 = vmatpush1.msra.mxu0 0.0
    %806 = vmatprep.subr.mxu0 0.0
    %807 = vmatpush1.msra.mxu0 0.0
    %808 = vmatprep.mubr.f32.mxu0 0.0
    %809 = vmatmul.mubr.f32.gmra.mrb[0].mxu0 %v103
    %v810 = vpop.f32.mrb[0].mxu0
    %v811 = vadd.f32 0.0, %v810
    %v812 = vpop.f32.mrb[0].mxu0
    %813 = vmatprep.mubr.f32.mxu0 0.0
    %814 = vmatmul.mubr.f32.gmra.mrb[0].mxu0 %v106
    %v815 = vpop.f32.mrb[0].mxu0
    %v816 = vadd.f32 0.0, %v815
    %v817 = vpop.f32.mrb[0].mxu0
    %818 = vmatprep.mubr.f32.mxu0 0.0
    %819 = vmatmul.mubr.f32.gmra.mrb[0].mxu0 %v109
    %v820 = vpop.f32.mrb[0].mxu0
    %v821 = vadd.f32 0.0, %v820
    %v822 = vpop.f32.mrb[0].mxu0
    %823 = vmatprep.mubr.f32.mxu0 0.0
    %824 = vmatmul.mubr.f32.gmra.mrb[0].mxu0 %v112
    %v825 = vpop.f32.mrb[0].mxu0
    %v826 = vadd.f32 0.0, %v825
    %v827 = vpop.f32.mrb[0].mxu0
    %828 = vmatprep.mubr.f32.mxu0 0.0
    %829 = vmatmul.mubr.f32.gmra.mrb[0].mxu0 %v115
    %v830 = vpop.f32.mrb[0].mxu0
    %v831 = vadd.f32 0.0, %v830
    %v832 = vpop.f32.mrb[0].mxu0
    %833 = vmatprep.mubr.f32.mxu0 0.0
    %834 = vmatmul.mubr.f32.gmra.mrb[0].mxu0 %v118
    %v835 = vpop.f32.mrb[0].mxu0
    %v836 = vadd.f32 0.0, %v835
    %v837 = vpop.f32.mrb[0].mxu0
    %838 = vmatprep.mubr.f32.mxu0 0.0
    %839 = vmatmul.mubr.f32.gmra.mrb[0].mxu0 %v121
    %v840 = vpop.f32.mrb[0].mxu0
    %v841 = vadd.f32 0.0, %v840
    %v842 = vpop.f32.mrb[0].mxu0
    %843 = vmatprep.mubr.f32.mxu0 0.0
    %844 = vmatmul.mubr.f32.gmra.mrb[0].mxu0 %v124
    %v845 = vpop.f32.mrb[0].mxu0
    %v846 = vadd.f32 0.0, %v845
    %v847 = vpop.f32.mrb[0].mxu0
    %848 = vmatprep.mubr.f32.mxu0 0.0
    %849 = vmatmul.mubr.f32.gmra.mrb[0].mxu0 %v127
    %v850 = vpop.f32.mrb[0].mxu0
    %v851 = vadd.f32 0.0, %v850
    %v852 = vpop.f32.mrb[0].mxu0
    %853 = vmatprep.mubr.f32.mxu0 0.0
    %854 = vmatmul.mubr.f32.gmra.mrb[0].mxu0 %v130
    %v855 = vpop.f32.mrb[0].mxu0
    %v856 = vadd.f32 0.0, %v855
    %v857 = vpop.f32.mrb[0].mxu0
    %858 = vmatprep.mubr.f32.mxu0 0.0
    %859 = vmatmul.mubr.f32.gmra.mrb[0].mxu0 %v133
    %v860 = vpop.f32.mrb[0].mxu0
    %v861 = vadd.f32 0.0, %v860
    %v862 = vpop.f32.mrb[0].mxu0
    %863 = vmatprep.mubr.f32.mxu0 0.0
    %864 = vmatmul.mubr.f32.gmra.mrb[0].mxu0 %v136
    %v865 = vpop.f32.mrb[0].mxu0
    %v866 = vadd.f32 0.0, %v865
    %v867 = vpop.f32.mrb[0].mxu0
    %868 = vmatprep.mubr.f32.mxu0 0.0
    %869 = vmatmul.mubr.f32.gmra.mrb[0].mxu0 %v139
    %v870 = vpop.f32.mrb[0].mxu0
    %v871 = vadd.f32 0.0, %v870
    %v872 = vpop.f32.mrb[0].mxu0
    %873 = vmatprep.mubr.f32.mxu0 0.0
    %874 = vmatmul.mubr.f32.gmra.mrb[0].mxu0 %v142
    %v875 = vpop.f32.mrb[0].mxu0
    %v876 = vadd.f32 0.0, %v875
    %v877 = vpop.f32.mrb[0].mxu0
    %878 = vmatprep.mubr.f32.mxu0 0.0
    %879 = vmatmul.mubr.f32.gmra.mrb[0].mxu0 %v145
    %v880 = vpop.f32.mrb[0].mxu0
    %v881 = vadd.f32 0.0, %v880
    %v882 = vpop.f32.mrb[0].mxu0
    %883 = vmatprep.mubr.f32.mxu0 0.0
    %884 = vmatmul.mubr.f32.gmra.mrb[0].mxu0 %v148
    %v885 = vpop.f32.mrb[0].mxu0
    %v886 = vadd.f32 0.0, %v885
    %v887 = vpop.f32.mrb[0].mxu0
    %888 = vmatprep.mubr.f32.mxu0 0.0
    %889 = vmatmul.mubr.f32.gmra.mrb[0].mxu0 %v151
    %v890 = vpop.f32.mrb[0].mxu0
    %v891 = vadd.f32 0.0, %v890
    %v892 = vpop.f32.mrb[0].mxu0
    %893 = vmatprep.mubr.f32.mxu0 0.0
    %894 = vmatmul.mubr.f32.gmra.mrb[0].mxu0 %v154
    %v895 = vpop.f32.mrb[0].mxu0
    %v896 = vadd.f32 0.0, %v895
    %v897 = vpop.f32.mrb[0].mxu0
    %898 = vmatprep.mubr.f32.mxu0 0.0
    %899 = vmatmul.mubr.f32.gmra.mrb[0].mxu0 %v157
    %v900 = vpop.f32.mrb[0].mxu0
    %v901 = vadd.f32 0.0, %v900
    %v902 = vpop.f32.mrb[0].mxu0
    %903 = vmatprep.mubr.f32.mxu0 0.0
    %904 = vmatmul.mubr.f32.gmra.mrb[0].mxu0 %v160
    %v905 = vpop.f32.mrb[0].mxu0
    %v906 = vadd.f32 0.0, %v905
    %v907 = vpop.f32.mrb[0].mxu0
    %908 = vmatprep.mubr.f32.mxu0 0.0
    %909 = vmatmul.mubr.f32.gmra.mrb[0].mxu0 %v163
    %v910 = vpop.f32.mrb[0].mxu0
    %v911 = vadd.f32 0.0, %v910
    %v912 = vpop.f32.mrb[0].mxu0
    %913 = vmatprep.mubr.f32.mxu0 0.0
    %914 = vmatmul.mubr.f32.gmra.mrb[0].mxu0 %v166
    %v915 = vpop.f32.mrb[0].mxu0
    %v916 = vadd.f32 0.0, %v915
    %v917 = vpop.f32.mrb[0].mxu0
    %918 = vmatprep.mubr.f32.mxu0 0.0
    %919 = vmatmul.mubr.f32.gmra.mrb[0].mxu0 %v169
    %v920 = vpop.f32.mrb[0].mxu0
    %v921 = vadd.f32 0.0, %v920
    %v922 = vpop.f32.mrb[0].mxu0
    %923 = vmatprep.mubr.f32.mxu0 0.0
    %924 = vmatmul.mubr.f32.gmra.mrb[0].mxu0 %v172
    %v925 = vpop.f32.mrb[0].mxu0
    %v926 = vadd.f32 0.0, %v925
    %v927 = vpop.f32.mrb[0].mxu0
    %928 = vmatprep.mubr.f32.mxu0 0.0
    %929 = vmatmul.mubr.f32.gmra.mrb[0].mxu0 %v175
    %v930 = vpop.f32.mrb[0].mxu0
    %v931 = vadd.f32 0.0, %v930
    %v932 = vpop.f32.mrb[0].mxu0
    %933 = vmatprep.mubr.f32.mxu0 0.0
    %934 = vmatmul.mubr.f32.gmra.mrb[0].mxu0 %v178
    %v935 = vpop.f32.mrb[0].mxu0
    %v936 = vadd.f32 0.0, %v935
    %v937 = vpop.f32.mrb[0].mxu0
    %938 = vmatprep.mubr.f32.mxu0 0.0
    %939 = vmatmul.mubr.f32.gmra.mrb[0].mxu0 %v181
    %v940 = vpop.f32.mrb[0].mxu0
    %v941 = vadd.f32 0.0, %v940
    %v942 = vpop.f32.mrb[0].mxu0
    %943 = vmatprep.mubr.f32.mxu0 0.0
    %944 = vmatmul.mubr.f32.gmra.mrb[0].mxu0 %v184
    %v945 = vpop.f32.mrb[0].mxu0
    %v946 = vadd.f32 0.0, %v945
    %v947 = vpop.f32.mrb[0].mxu0
    %948 = vmatprep.mubr.f32.mxu0 0.0
    %949 = vmatmul.mubr.f32.gmra.mrb[0].mxu0 %v187
    %v950 = vpop.f32.mrb[0].mxu0
    %v951 = vadd.f32 0.0, %v950
    %v952 = vpop.f32.mrb[0].mxu0
    %953 = vmatprep.mubr.f32.mxu0 0.0
    %954 = vmatmul.mubr.f32.gmra.mrb[0].mxu0 %v190
    %v955 = vpop.f32.mrb[0].mxu0
    %v956 = vadd.f32 0.0, %v955
    %v957 = vpop.f32.mrb[0].mxu0
    %958 = vmatprep.mubr.f32.mxu0 0.0
    %959 = vmatmul.mubr.f32.gmra.mrb[0].mxu0 %v193
    %v960 = vpop.f32.mrb[0].mxu0
    %v961 = vadd.f32 0.0, %v960
    %v962 = vpop.f32.mrb[0].mxu0
    %963 = vmatprep.mubr.f32.mxu0 0.0
    %964 = vmatmul.mubr.f32.gmra.mrb[0].mxu0 %v196
    %v965 = vpop.f32.mrb[0].mxu0
    %v966 = vadd.f32 0.0, %v965
    %v967 = vpop.f32.mrb[0].mxu0
    %968 = vdwg.mxu0
    %969 = vmatprep.subr.mxu0 0.0
    %970 = vmatpush1.msra.mxu0 %v99
    %971 = vmatprep.subr.mxu0 0.0
    %972 = vmatpush1.msra.mxu0 %v100
    %973 = vmatprep.subr.mxu0 0.0
    %974 = vmatpush1.msra.mxu0 0.0
    %975 = vmatprep.subr.mxu0 0.0
    %976 = vmatpush1.msra.mxu0 0.0
    %977 = vmatprep.subr.mxu0 0.0
    %978 = vmatpush1.msra.mxu0 0.0
    %979 = vmatprep.subr.mxu0 0.0
    %980 = vmatpush1.msra.mxu0 0.0
    %981 = vmatprep.subr.mxu0 0.0
    %982 = vmatpush1.msra.mxu0 0.0
    %983 = vmatprep.subr.mxu0 0.0
    %984 = vmatpush1.msra.mxu0 0.0
    %985 = vmatprep.subr.mxu0 0.0
    %986 = vmatpush1.msra.mxu0 0.0
    %987 = vmatprep.subr.mxu0 0.0
    %988 = vmatpush1.msra.mxu0 0.0
    %989 = vmatprep.subr.mxu0 0.0
    %990 = vmatpush1.msra.mxu0 0.0
    %991 = vmatprep.subr.mxu0 0.0
    %992 = vmatpush1.msra.mxu0 0.0
    %993 = vmatprep.subr.mxu0 0.0
    %994 = vmatpush1.msra.mxu0 0.0
    %995 = vmatprep.subr.mxu0 0.0
    %996 = vmatpush1.msra.mxu0 0.0
    %997 = vmatprep.subr.mxu0 0.0
    %998 = vmatpush1.msra.mxu0 0.0
    %999 = vmatprep.subr.mxu0 0.0
    %1000 = vmatpush1.msra.mxu0 0.0
    %1001 = vmatprep.subr.mxu0 0.0
    %1002 = vmatpush1.msra.mxu0 0.0
    %1003 = vmatprep.subr.mxu0 0.0
    %1004 = vmatpush1.msra.mxu0 0.0
    %1005 = vmatprep.subr.mxu0 0.0
    %1006 = vmatpush1.msra.mxu0 0.0
    %1007 = vmatprep.subr.mxu0 0.0
    %1008 = vmatpush1.msra.mxu0 0.0
    %1009 = vmatprep.subr.mxu0 0.0
    %1010 = vmatpush1.msra.mxu0 0.0
    %1011 = vmatprep.subr.mxu0 0.0
    %1012 = vmatpush1.msra.mxu0 0.0
    %1013 = vmatprep.subr.mxu0 0.0
    %1014 = vmatpush1.msra.mxu0 0.0
    %1015 = vmatprep.subr.mxu0 0.0
    %1016 = vmatpush1.msra.mxu0 0.0
    %1017 = vmatprep.subr.mxu0 0.0
    %1018 = vmatpush1.msra.mxu0 0.0
    %1019 = vmatprep.subr.mxu0 0.0
    %1020 = vmatpush1.msra.mxu0 0.0
    %1021 = vmatprep.subr.mxu0 0.0
    %1022 = vmatpush1.msra.mxu0 0.0
    %1023 = vmatprep.subr.mxu0 0.0
    %1024 = vmatpush1.msra.mxu0 0.0
    %1025 = vmatprep.subr.mxu0 0.0
    %1026 = vmatpush1.msra.mxu0 0.0
    %1027 = vmatprep.subr.mxu0 0.0
    %1028 = vmatpush1.msra.mxu0 0.0
    %1029 = vmatprep.subr.mxu0 0.0
    %1030 = vmatpush1.msra.mxu0 0.0
    %1031 = vmatprep.subr.mxu0 0.0
    %1032 = vmatpush1.msra.mxu0 0.0
    %1033 = vmatprep.mubr.f32.mxu0 0.0
    %1034 = vmatmul.mubr.f32.gmra.mrb[0].mxu0 %v424
    %v1035 = vpop.f32.mrb[0].mxu0
    %v1036 = vadd.f32 0.0, %v1035
    %v1037 = vpop.f32.mrb[0].mxu0
    %1038 = vmatprep.mubr.f32.mxu0 0.0
    %1039 = vmatmul.mubr.f32.gmra.mrb[0].mxu0 %v427
    %v1040 = vpop.f32.mrb[0].mxu0
    %v1041 = vadd.f32 0.0, %v1040
    %v1042 = vpop.f32.mrb[0].mxu0
    %1043 = vmatprep.mubr.f32.mxu0 0.0
    %1044 = vmatmul.mubr.f32.gmra.mrb[0].mxu0 %v430
    %v1045 = vpop.f32.mrb[0].mxu0
    %v1046 = vadd.f32 0.0, %v1045
    %v1047 = vpop.f32.mrb[0].mxu0
    %1048 = vmatprep.mubr.f32.mxu0 0.0
    %1049 = vmatmul.mubr.f32.gmra.mrb[0].mxu0 %v433
    %v1050 = vpop.f32.mrb[0].mxu0
    %v1051 = vadd.f32 0.0, %v1050
    %v1052 = vpop.f32.mrb[0].mxu0
    %1053 = vmatprep.mubr.f32.mxu0 0.0
    %1054 = vmatmul.mubr.f32.gmra.mrb[0].mxu0 %v436
    %v1055 = vpop.f32.mrb[0].mxu0
    %v1056 = vadd.f32 0.0, %v1055
    %v1057 = vpop.f32.mrb[0].mxu0
    %1058 = vmatprep.mubr.f32.mxu0 0.0
    %1059 = vmatmul.mubr.f32.gmra.mrb[0].mxu0 %v439
    %v1060 = vpop.f32.mrb[0].mxu0
    %v1061 = vadd.f32 0.0, %v1060
    %v1062 = vpop.f32.mrb[0].mxu0
    %1063 = vmatprep.mubr.f32.mxu0 0.0
    %1064 = vmatmul.mubr.f32.gmra.mrb[0].mxu0 %v442
    %v1065 = vpop.f32.mrb[0].mxu0
    %v1066 = vadd.f32 0.0, %v1065
    %v1067 = vpop.f32.mrb[0].mxu0
    %1068 = vmatprep.mubr.f32.mxu0 0.0
    %1069 = vmatmul.mubr.f32.gmra.mrb[0].mxu0 %v445
    %v1070 = vpop.f32.mrb[0].mxu0
    %v1071 = vadd.f32 0.0, %v1070
    %v1072 = vpop.f32.mrb[0].mxu0
    %1073 = vmatprep.mubr.f32.mxu0 0.0
    %1074 = vmatmul.mubr.f32.gmra.mrb[0].mxu0 %v448
    %v1075 = vpop.f32.mrb[0].mxu0
    %v1076 = vadd.f32 0.0, %v1075
    %v1077 = vpop.f32.mrb[0].mxu0
    %1078 = vmatprep.mubr.f32.mxu0 0.0
    %1079 = vmatmul.mubr.f32.gmra.mrb[0].mxu0 %v451
    %v1080 = vpop.f32.mrb[0].mxu0
    %v1081 = vadd.f32 0.0, %v1080
    %v1082 = vpop.f32.mrb[0].mxu0
    %1083 = vmatprep.mubr.f32.mxu0 0.0
    %1084 = vmatmul.mubr.f32.gmra.mrb[0].mxu0 %v454
    %v1085 = vpop.f32.mrb[0].mxu0
    %v1086 = vadd.f32 0.0, %v1085
    %v1087 = vpop.f32.mrb[0].mxu0
    %1088 = vmatprep.mubr.f32.mxu0 0.0
    %1089 = vmatmul.mubr.f32.gmra.mrb[0].mxu0 %v457
    %v1090 = vpop.f32.mrb[0].mxu0
    %v1091 = vadd.f32 0.0, %v1090
    %v1092 = vpop.f32.mrb[0].mxu0
    %1093 = vmatprep.mubr.f32.mxu0 0.0
    %1094 = vmatmul.mubr.f32.gmra.mrb[0].mxu0 %v460
    %v1095 = vpop.f32.mrb[0].mxu0
    %v1096 = vadd.f32 0.0, %v1095
    %v1097 = vpop.f32.mrb[0].mxu0
    %1098 = vmatprep.mubr.f32.mxu0 0.0
    %1099 = vmatmul.mubr.f32.gmra.mrb[0].mxu0 %v463
    %v1100 = vpop.f32.mrb[0].mxu0
    %v1101 = vadd.f32 0.0, %v1100
    %v1102 = vpop.f32.mrb[0].mxu0
    %1103 = vmatprep.mubr.f32.mxu0 0.0
    %1104 = vmatmul.mubr.f32.gmra.mrb[0].mxu0 %v466
    %v1105 = vpop.f32.mrb[0].mxu0
    %v1106 = vadd.f32 0.0, %v1105
    %v1107 = vpop.f32.mrb[0].mxu0
    %1108 = vmatprep.mubr.f32.mxu0 0.0
    %1109 = vmatmul.mubr.f32.gmra.mrb[0].mxu0 %v469
    %v1110 = vpop.f32.mrb[0].mxu0
    %v1111 = vadd.f32 0.0, %v1110
    %v1112 = vpop.f32.mrb[0].mxu0
    %1113 = vmatprep.mubr.f32.mxu0 0.0
    %1114 = vmatmul.mubr.f32.gmra.mrb[0].mxu0 %v472
    %v1115 = vpop.f32.mrb[0].mxu0
    %v1116 = vadd.f32 0.0, %v1115
    %v1117 = vpop.f32.mrb[0].mxu0
    %1118 = vmatprep.mubr.f32.mxu0 0.0
    %1119 = vmatmul.mubr.f32.gmra.mrb[0].mxu0 %v475
    %v1120 = vpop.f32.mrb[0].mxu0
    %v1121 = vadd.f32 0.0, %v1120
    %v1122 = vpop.f32.mrb[0].mxu0
    %1123 = vmatprep.mubr.f32.mxu0 0.0
    %1124 = vmatmul.mubr.f32.gmra.mrb[0].mxu0 %v478
    %v1125 = vpop.f32.mrb[0].mxu0
    %v1126 = vadd.f32 0.0, %v1125
    %v1127 = vpop.f32.mrb[0].mxu0
    %1128 = vmatprep.mubr.f32.mxu0 0.0
    %1129 = vmatmul.mubr.f32.gmra.mrb[0].mxu0 %v481
    %v1130 = vpop.f32.mrb[0].mxu0
    %v1131 = vadd.f32 0.0, %v1130
    %v1132 = vpop.f32.mrb[0].mxu0
    %1133 = vmatprep.mubr.f32.mxu0 0.0
    %1134 = vmatmul.mubr.f32.gmra.mrb[0].mxu0 %v484
    %v1135 = vpop.f32.mrb[0].mxu0
    %v1136 = vadd.f32 0.0, %v1135
    %v1137 = vpop.f32.mrb[0].mxu0
    %1138 = vmatprep.mubr.f32.mxu0 0.0
    %1139 = vmatmul.mubr.f32.gmra.mrb[0].mxu0 %v487
    %v1140 = vpop.f32.mrb[0].mxu0
    %v1141 = vadd.f32 0.0, %v1140
    %v1142 = vpop.f32.mrb[0].mxu0
    %1143 = vmatprep.mubr.f32.mxu0 0.0
    %1144 = vmatmul.mubr.f32.gmra.mrb[0].mxu0 %v490
    %v1145 = vpop.f32.mrb[0].mxu0
    %v1146 = vadd.f32 0.0, %v1145
    %v1147 = vpop.f32.mrb[0].mxu0
    %1148 = vmatprep.mubr.f32.mxu0 0.0
    %1149 = vmatmul.mubr.f32.gmra.mrb[0].mxu0 %v493
    %v1150 = vpop.f32.mrb[0].mxu0
    %v1151 = vadd.f32 0.0, %v1150
    %v1152 = vpop.f32.mrb[0].mxu0
    %1153 = vmatprep.mubr.f32.mxu0 0.0
    %1154 = vmatmul.mubr.f32.gmra.mrb[0].mxu0 %v496
    %v1155 = vpop.f32.mrb[0].mxu0
    %v1156 = vadd.f32 0.0, %v1155
    %v1157 = vpop.f32.mrb[0].mxu0
    %1158 = vmatprep.mubr.f32.mxu0 0.0
    %1159 = vmatmul.mubr.f32.gmra.mrb[0].mxu0 %v499
    %v1160 = vpop.f32.mrb[0].mxu0
    %v1161 = vadd.f32 0.0, %v1160
    %v1162 = vpop.f32.mrb[0].mxu0
    %1163 = vmatprep.mubr.f32.mxu0 0.0
    %1164 = vmatmul.mubr.f32.gmra.mrb[0].mxu0 %v502
    %v1165 = vpop.f32.mrb[0].mxu0
    %v1166 = vadd.f32 0.0, %v1165
    %v1167 = vpop.f32.mrb[0].mxu0
    %1168 = vmatprep.mubr.f32.mxu0 0.0
    %1169 = vmatmul.mubr.f32.gmra.mrb[0].mxu0 %v505
    %v1170 = vpop.f32.mrb[0].mxu0
    %v1171 = vadd.f32 0.0, %v1170
    %v1172 = vpop.f32.mrb[0].mxu0
    %1173 = vmatprep.mubr.f32.mxu0 0.0
    %1174 = vmatmul.mubr.f32.gmra.mrb[0].mxu0 %v508
    %v1175 = vpop.f32.mrb[0].mxu0
    %v1176 = vadd.f32 0.0, %v1175
    %v1177 = vpop.f32.mrb[0].mxu0
    %1178 = vmatprep.mubr.f32.mxu0 0.0
    %1179 = vmatmul.mubr.f32.gmra.mrb[0].mxu0 %v511
    %v1180 = vpop.f32.mrb[0].mxu0
    %v1181 = vadd.f32 0.0, %v1180
    %v1182 = vpop.f32.mrb[0].mxu0
    %1183 = vmatprep.mubr.f32.mxu0 0.0
    %1184 = vmatmul.mubr.f32.gmra.mrb[0].mxu0 %v514
    %v1185 = vpop.f32.mrb[0].mxu0
    %v1186 = vadd.f32 0.0, %v1185
    %v1187 = vpop.f32.mrb[0].mxu0
    %1188 = vmatprep.mubr.f32.mxu0 0.0
    %1189 = vmatmul.mubr.f32.gmra.mrb[0].mxu0 %v517
    %v1190 = vpop.f32.mrb[0].mxu0
    %v1191 = vadd.f32 0.0, %v1190
    %v1192 = vpop.f32.mrb[0].mxu0
    %1193 = vdwg.mxu0
    %1226 = vrot.lane.b32.xlu0 %v586, 32
    %v1227 = vpop.permute.xlu0 %1226
    %1228 = vrot.lane.b32.xlu0 %v591, 32
    %v1229 = vpop.permute.xlu0 %1228
    %1230 = vrot.lane.b32.xlu0 %v596, 32
    %v1231 = vpop.permute.xlu0 %1230
    %1232 = vrot.lane.b32.xlu0 %v601, 32
    %v1233 = vpop.permute.xlu0 %1232
    %1234 = vrot.lane.b32.xlu0 %v606, 32
    %v1235 = vpop.permute.xlu0 %1234
    %1236 = vrot.lane.b32.xlu0 %v611, 32
    %v1237 = vpop.permute.xlu0 %1236
    %1238 = vrot.lane.b32.xlu0 %v616, 32
    %v1239 = vpop.permute.xlu0 %1238
    %1240 = vrot.lane.b32.xlu0 %v621, 32
    %v1241 = vpop.permute.xlu0 %1240
    %1242 = vrot.lane.b32.xlu0 %v626, 32
    %v1243 = vpop.permute.xlu0 %1242
    %1244 = vrot.lane.b32.xlu0 %v631, 32
    %v1245 = vpop.permute.xlu0 %1244
    %1246 = vrot.lane.b32.xlu0 %v636, 32
    %v1247 = vpop.permute.xlu0 %1246
    %1248 = vrot.lane.b32.xlu0 %v641, 32
    %v1249 = vpop.permute.xlu0 %1248
    %1250 = vrot.lane.b32.xlu0 %v646, 32
    %v1251 = vpop.permute.xlu0 %1250
    %1252 = vrot.lane.b32.xlu0 %v651, 32
    %v1253 = vpop.permute.xlu0 %1252
    %1254 = vrot.lane.b32.xlu0 %v656, 32
    %v1255 = vpop.permute.xlu0 %1254
    %1256 = vrot.lane.b32.xlu0 %v661, 32
    %v1257 = vpop.permute.xlu0 %1256
    %1258 = vrot.lane.b32.xlu0 %v666, 32
    %v1259 = vpop.permute.xlu0 %1258
    %1260 = vrot.lane.b32.xlu0 %v671, 32
    %v1261 = vpop.permute.xlu0 %1260
    %1262 = vrot.lane.b32.xlu0 %v676, 32
    %v1263 = vpop.permute.xlu0 %1262
    %1264 = vrot.lane.b32.xlu0 %v681, 32
    %v1265 = vpop.permute.xlu0 %1264
    %1266 = vrot.lane.b32.xlu0 %v686, 32
    %v1267 = vpop.permute.xlu0 %1266
    %1268 = vrot.lane.b32.xlu0 %v691, 32
    %v1269 = vpop.permute.xlu0 %1268
    %1270 = vrot.lane.b32.xlu0 %v696, 32
    %v1271 = vpop.permute.xlu0 %1270
    %1272 = vrot.lane.b32.xlu0 %v701, 32
    %v1273 = vpop.permute.xlu0 %1272
    %1274 = vrot.lane.b32.xlu0 %v706, 32
    %v1275 = vpop.permute.xlu0 %1274
    %1276 = vrot.lane.b32.xlu0 %v711, 32
    %v1277 = vpop.permute.xlu0 %1276
    %1278 = vrot.lane.b32.xlu0 %v716, 32
    %v1279 = vpop.permute.xlu0 %1278
    %1280 = vrot.lane.b32.xlu0 %v721, 32
    %v1281 = vpop.permute.xlu0 %1280
    %1282 = vrot.lane.b32.xlu0 %v726, 32
    %v1283 = vpop.permute.xlu0 %1282
    %1284 = vrot.lane.b32.xlu0 %v731, 32
    %v1285 = vpop.permute.xlu0 %1284
    %1286 = vrot.lane.b32.xlu0 %v736, 32
    %v1287 = vpop.permute.xlu0 %1286
    %1288 = vrot.lane.b32.xlu0 %v741, 32
    %v1289 = vpop.permute.xlu0 %1288
    %vm1322 = vcmask 261120
    %v1323 = vsel %vm1322, %v265, %v1227
    %v1324 = vsel %vm1322, %v270, %v1229
    %v1325 = vsel %vm1322, %v275, %v1231
    %v1326 = vsel %vm1322, %v280, %v1233
    %v1327 = vsel %vm1322, %v285, %v1235
    %v1328 = vsel %vm1322, %v290, %v1237
    %v1329 = vsel %vm1322, %v295, %v1239
    %v1330 = vsel %vm1322, %v300, %v1241
    %v1331 = vsel %vm1322, %v305, %v1243
    %v1332 = vsel %vm1322, %v310, %v1245
    %v1333 = vsel %vm1322, %v315, %v1247
    %v1334 = vsel %vm1322, %v320, %v1249
    %v1335 = vsel %vm1322, %v325, %v1251
    %v1336 = vsel %vm1322, %v330, %v1253
    %v1337 = vsel %vm1322, %v335, %v1255
    %v1338 = vsel %vm1322, %v340, %v1257
    %v1339 = vsel %vm1322, %v345, %v1259
    %v1340 = vsel %vm1322, %v350, %v1261
    %v1341 = vsel %vm1322, %v355, %v1263
    %v1342 = vsel %vm1322, %v360, %v1265
    %v1343 = vsel %vm1322, %v365, %v1267
    %v1344 = vsel %vm1322, %v370, %v1269
    %v1345 = vsel %vm1322, %v375, %v1271
    %v1346 = vsel %vm1322, %v380, %v1273
    %v1347 = vsel %vm1322, %v385, %v1275
    %v1348 = vsel %vm1322, %v390, %v1277
    %v1349 = vsel %vm1322, %v395, %v1279
    %v1350 = vsel %vm1322, %v400, %v1281
    %v1351 = vsel %vm1322, %v405, %v1283
    %v1352 = vsel %vm1322, %v410, %v1285
    %v1353 = vsel %vm1322, %v415, %v1287
    %v1354 = vsel %vm1322, %v420, %v1289
    %v1355 = vpack.c.bf16 %v1324, %v1323
    %v1356 = vpack.c.bf16 %v1326, %v1325
    %v1357 = vpack.c.bf16 %v1328, %v1327
    %v1358 = vpack.c.bf16 %v1330, %v1329
    %v1359 = vpack.c.bf16 %v1332, %v1331
    %v1360 = vpack.c.bf16 %v1334, %v1333
    %v1361 = vpack.c.bf16 %v1336, %v1335
    %v1362 = vpack.c.bf16 %v1338, %v1337
    %v1363 = vpack.c.bf16 %v1340, %v1339
    %v1364 = vpack.c.bf16 %v1342, %v1341
    %v1365 = vpack.c.bf16 %v1344, %v1343
    %v1366 = vpack.c.bf16 %v1346, %v1345
    %v1367 = vpack.c.bf16 %v1348, %v1347
    %v1368 = vpack.c.bf16 %v1350, %v1349
    %v1369 = vpack.c.bf16 %v1352, %v1351
    %v1370 = vpack.c.bf16 %v1354, %v1353
    %v1387 = vunpack.c.l.b16 %v1355
    %v1388 = vunpack.c.h.b16 %v1355
    %v1389 = vunpack.c.l.b16 %v1356
    %v1390 = vunpack.c.h.b16 %v1356
    %v1391 = vunpack.c.l.b16 %v1357
    %v1392 = vunpack.c.h.b16 %v1357
    %v1393 = vunpack.c.l.b16 %v1358
    %v1394 = vunpack.c.h.b16 %v1358
    %v1395 = vunpack.c.l.b16 %v1359
    %v1396 = vunpack.c.h.b16 %v1359
    %v1397 = vunpack.c.l.b16 %v1360
    %v1398 = vunpack.c.h.b16 %v1360
    %v1399 = vunpack.c.l.b16 %v1361
    %v1400 = vunpack.c.h.b16 %v1361
    %v1401 = vunpack.c.l.b16 %v1362
    %v1402 = vunpack.c.h.b16 %v1362
    %v1403 = vunpack.c.l.b16 %v1363
    %v1404 = vunpack.c.h.b16 %v1363
    %v1405 = vunpack.c.l.b16 %v1364
    %v1406 = vunpack.c.h.b16 %v1364
    %v1407 = vunpack.c.l.b16 %v1365
    %v1408 = vunpack.c.h.b16 %v1365
    %v1409 = vunpack.c.l.b16 %v1366
    %v1410 = vunpack.c.h.b16 %v1366
    %v1411 = vunpack.c.l.b16 %v1367
    %v1412 = vunpack.c.h.b16 %v1367
    %v1413 = vunpack.c.l.b16 %v1368
    %v1414 = vunpack.c.h.b16 %v1368
    %v1415 = vunpack.c.l.b16 %v1369
    %v1416 = vunpack.c.h.b16 %v1369
    %v1417 = vunpack.c.l.b16 %v1370
    %v1418 = vunpack.c.h.b16 %v1370
    %v1419 = vpack.c.b16 %v1387, %v1387
    %v1420 = vpack.c.b16 %v1388, %v1388
    %v1421 = vpack.c.b16 %v1389, %v1389
    %v1422 = vpack.c.b16 %v1390, %v1390
    %v1423 = vpack.c.b16 %v1391, %v1391
    %v1424 = vpack.c.b16 %v1392, %v1392
    %v1425 = vpack.c.b16 %v1393, %v1393
    %v1426 = vpack.c.b16 %v1394, %v1394
    %v1427 = vpack.c.b16 %v1395, %v1395
    %v1428 = vpack.c.b16 %v1396, %v1396
    %v1429 = vpack.c.b16 %v1397, %v1397
    %v1430 = vpack.c.b16 %v1398, %v1398
    %v1431 = vpack.c.b16 %v1399, %v1399
    %v1432 = vpack.c.b16 %v1400, %v1400
    %v1433 = vpack.c.b16 %v1401, %v1401
    %v1434 = vpack.c.b16 %v1402, %v1402
    %v1435 = vpack.c.b16 %v1403, %v1403
    %v1436 = vpack.c.b16 %v1404, %v1404
    %v1437 = vpack.c.b16 %v1405, %v1405
    %v1438 = vpack.c.b16 %v1406, %v1406
    %v1439 = vpack.c.b16 %v1407, %v1407
    %v1440 = vpack.c.b16 %v1408, %v1408
    %v1441 = vpack.c.b16 %v1409, %v1409
    %v1442 = vpack.c.b16 %v1410, %v1410
    %v1443 = vpack.c.b16 %v1411, %v1411
    %v1444 = vpack.c.b16 %v1412, %v1412
    %v1445 = vpack.c.b16 %v1413, %v1413
    %v1446 = vpack.c.b16 %v1414, %v1414
    %v1447 = vpack.c.b16 %v1415, %v1415
    %v1448 = vpack.c.b16 %v1416, %v1416
    %v1449 = vpack.c.b16 %v1417, %v1417
    %v1450 = vpack.c.b16 %v1418, %v1418
    %vm1483 = vcmask 519168
    %1484 = vst.msk [vmem:[%s7] sm:$0xf] %vm1483, %v1419
    %1485 = vst.msk [vmem:[%s7 + $0x4] sm:$0xf] %vm1483, %v1420
    %1486 = vst.msk [vmem:[%s7 + $0x8] sm:$0xf] %vm1483, %v1421
    %1487 = vst.msk [vmem:[%s7 + $0xc] sm:$0xf] %vm1483, %v1422
    %1488 = vst.msk [vmem:[%s7 + $0x10] sm:$0xf] %vm1483, %v1423
    %1489 = vst.msk [vmem:[%s7 + $0x14] sm:$0xf] %vm1483, %v1424
    %1490 = vst.msk [vmem:[%s7 + $0x18] sm:$0xf] %vm1483, %v1425
    %1491 = vst.msk [vmem:[%s7 + $0x1c] sm:$0xf] %vm1483, %v1426
    %1492 = vst.msk [vmem:[%s7 + $0x20] sm:$0xf] %vm1483, %v1427
    %1493 = vst.msk [vmem:[%s7 + $0x24] sm:$0xf] %vm1483, %v1428
    %1494 = vst.msk [vmem:[%s7 + $0x28] sm:$0xf] %vm1483, %v1429
    %1495 = vst.msk [vmem:[%s7 + $0x2c] sm:$0xf] %vm1483, %v1430
    %1496 = vst.msk [vmem:[%s7 + $0x30] sm:$0xf] %vm1483, %v1431
    %1497 = vst.msk [vmem:[%s7 + $0x34] sm:$0xf] %vm1483, %v1432
    %1498 = vst.msk [vmem:[%s7 + $0x38] sm:$0xf] %vm1483, %v1433
    %1499 = vst.msk [vmem:[%s7 + $0x3c] sm:$0xf] %vm1483, %v1434
    %1500 = vst.msk [vmem:[%s7 + $0x40] sm:$0xf] %vm1483, %v1435
    %1501 = vst.msk [vmem:[%s7 + $0x44] sm:$0xf] %vm1483, %v1436
    %1502 = vst.msk [vmem:[%s7 + $0x48] sm:$0xf] %vm1483, %v1437
    %1503 = vst.msk [vmem:[%s7 + $0x4c] sm:$0xf] %vm1483, %v1438
    %1504 = vst.msk [vmem:[%s7 + $0x50] sm:$0xf] %vm1483, %v1439
    %1505 = vst.msk [vmem:[%s7 + $0x54] sm:$0xf] %vm1483, %v1440
    %1506 = vst.msk [vmem:[%s7 + $0x58] sm:$0xf] %vm1483, %v1441
    %1507 = vst.msk [vmem:[%s7 + $0x5c] sm:$0xf] %vm1483, %v1442
    %1508 = vst.msk [vmem:[%s7 + $0x60] sm:$0xf] %vm1483, %v1443
    %1509 = vst.msk [vmem:[%s7 + $0x64] sm:$0xf] %vm1483, %v1444
    %1510 = vst.msk [vmem:[%s7 + $0x68] sm:$0xf] %vm1483, %v1445
    %1511 = vst.msk [vmem:[%s7 + $0x6c] sm:$0xf] %vm1483, %v1446
    %1512 = vst.msk [vmem:[%s7 + $0x70] sm:$0xf] %vm1483, %v1447
    %1513 = vst.msk [vmem:[%s7 + $0x74] sm:$0xf] %vm1483, %v1448
    %1514 = vst.msk [vmem:[%s7 + $0x78] sm:$0xf] %vm1483, %v1449
    %1515 = vst.msk [vmem:[%s7 + $0x7c] sm:$0xf] %vm1483, %v1450
    %1548 = vrot.lane.b32.xlu0 %v1036, 32
    %v1549 = vpop.permute.xlu0 %1548
    %1550 = vrot.lane.b32.xlu0 %v1041, 32
    %v1551 = vpop.permute.xlu0 %1550
    %1552 = vrot.lane.b32.xlu0 %v1046, 32
    %v1553 = vpop.permute.xlu0 %1552
    %1554 = vrot.lane.b32.xlu0 %v1051, 32
    %v1555 = vpop.permute.xlu0 %1554
    %1556 = vrot.lane.b32.xlu0 %v1056, 32
    %v1557 = vpop.permute.xlu0 %1556
    %1558 = vrot.lane.b32.xlu0 %v1061, 32
    %v1559 = vpop.permute.xlu0 %1558
    %1560 = vrot.lane.b32.xlu0 %v1066, 32
    %v1561 = vpop.permute.xlu0 %1560
    %1562 = vrot.lane.b32.xlu0 %v1071, 32
    %v1563 = vpop.permute.xlu0 %1562
    %1564 = vrot.lane.b32.xlu0 %v1076, 32
    %v1565 = vpop.permute.xlu0 %1564
    %1566 = vrot.lane.b32.xlu0 %v1081, 32
    %v1567 = vpop.permute.xlu0 %1566
    %1568 = vrot.lane.b32.xlu0 %v1086, 32
    %v1569 = vpop.permute.xlu0 %1568
    %1570 = vrot.lane.b32.xlu0 %v1091, 32
    %v1571 = vpop.permute.xlu0 %1570
    %1572 = vrot.lane.b32.xlu0 %v1096, 32
    %v1573 = vpop.permute.xlu0 %1572
    %1574 = vrot.lane.b32.xlu0 %v1101, 32
    %v1575 = vpop.permute.xlu0 %1574
    %1576 = vrot.lane.b32.xlu0 %v1106, 32
    %v1577 = vpop.permute.xlu0 %1576
    %1578 = vrot.lane.b32.xlu0 %v1111, 32
    %v1579 = vpop.permute.xlu0 %1578
    %1580 = vrot.lane.b32.xlu0 %v1116, 32
    %v1581 = vpop.permute.xlu0 %1580
    %1582 = vrot.lane.b32.xlu0 %v1121, 32
    %v1583 = vpop.permute.xlu0 %1582
    %1584 = vrot.lane.b32.xlu0 %v1126, 32
    %v1585 = vpop.permute.xlu0 %1584
    %1586 = vrot.lane.b32.xlu0 %v1131, 32
    %v1587 = vpop.permute.xlu0 %1586
    %1588 = vrot.lane.b32.xlu0 %v1136, 32
    %v1589 = vpop.permute.xlu0 %1588
    %1590 = vrot.lane.b32.xlu0 %v1141, 32
    %v1591 = vpop.permute.xlu0 %1590
    %1592 = vrot.lane.b32.xlu0 %v1146, 32
    %v1593 = vpop.permute.xlu0 %1592
    %1594 = vrot.lane.b32.xlu0 %v1151, 32
    %v1595 = vpop.permute.xlu0 %1594
    %1596 = vrot.lane.b32.xlu0 %v1156, 32
    %v1597 = vpop.permute.xlu0 %1596
    %1598 = vrot.lane.b32.xlu0 %v1161, 32
    %v1599 = vpop.permute.xlu0 %1598
    %1600 = vrot.lane.b32.xlu0 %v1166, 32
    %v1601 = vpop.permute.xlu0 %1600
    %1602 = vrot.lane.b32.xlu0 %v1171, 32
    %v1603 = vpop.permute.xlu0 %1602
    %1604 = vrot.lane.b32.xlu0 %v1176, 32
    %v1605 = vpop.permute.xlu0 %1604
    %1606 = vrot.lane.b32.xlu0 %v1181, 32
    %v1607 = vpop.permute.xlu0 %1606
    %1608 = vrot.lane.b32.xlu0 %v1186, 32
    %v1609 = vpop.permute.xlu0 %1608
    %1610 = vrot.lane.b32.xlu0 %v1191, 32
    %v1611 = vpop.permute.xlu0 %1610
    %v1644 = vsel %vm1322, %v811, %v1549
    %v1645 = vsel %vm1322, %v816, %v1551
    %v1646 = vsel %vm1322, %v821, %v1553
    %v1647 = vsel %vm1322, %v826, %v1555
    %v1648 = vsel %vm1322, %v831, %v1557
    %v1649 = vsel %vm1322, %v836, %v1559
    %v1650 = vsel %vm1322, %v841, %v1561
    %v1651 = vsel %vm1322, %v846, %v1563
    %v1652 = vsel %vm1322, %v851, %v1565
    %v1653 = vsel %vm1322, %v856, %v1567
    %v1654 = vsel %vm1322, %v861, %v1569
    %v1655 = vsel %vm1322, %v866, %v1571
    %v1656 = vsel %vm1322, %v871, %v1573
    %v1657 = vsel %vm1322, %v876, %v1575
    %v1658 = vsel %vm1322, %v881, %v1577
    %v1659 = vsel %vm1322, %v886, %v1579
    %v1660 = vsel %vm1322, %v891, %v1581
    %v1661 = vsel %vm1322, %v896, %v1583
    %v1662 = vsel %vm1322, %v901, %v1585
    %v1663 = vsel %vm1322, %v906, %v1587
    %v1664 = vsel %vm1322, %v911, %v1589
    %v1665 = vsel %vm1322, %v916, %v1591
    %v1666 = vsel %vm1322, %v921, %v1593
    %v1667 = vsel %vm1322, %v926, %v1595
    %v1668 = vsel %vm1322, %v931, %v1597
    %v1669 = vsel %vm1322, %v936, %v1599
    %v1670 = vsel %vm1322, %v941, %v1601
    %v1671 = vsel %vm1322, %v946, %v1603
    %v1672 = vsel %vm1322, %v951, %v1605
    %v1673 = vsel %vm1322, %v956, %v1607
    %v1674 = vsel %vm1322, %v961, %v1609
    %v1675 = vsel %vm1322, %v966, %v1611
    %v1676 = vpack.c.bf16 %v1645, %v1644
    %v1677 = vpack.c.bf16 %v1647, %v1646
    %v1678 = vpack.c.bf16 %v1649, %v1648
    %v1679 = vpack.c.bf16 %v1651, %v1650
    %v1680 = vpack.c.bf16 %v1653, %v1652
    %v1681 = vpack.c.bf16 %v1655, %v1654
    %v1682 = vpack.c.bf16 %v1657, %v1656
    %v1683 = vpack.c.bf16 %v1659, %v1658
    %v1684 = vpack.c.bf16 %v1661, %v1660
    %v1685 = vpack.c.bf16 %v1663, %v1662
    %v1686 = vpack.c.bf16 %v1665, %v1664
    %v1687 = vpack.c.bf16 %v1667, %v1666
    %v1688 = vpack.c.bf16 %v1669, %v1668
    %v1689 = vpack.c.bf16 %v1671, %v1670
    %v1690 = vpack.c.bf16 %v1673, %v1672
    %v1691 = vpack.c.bf16 %v1675, %v1674
    %v1708 = vunpack.c.l.b16 %v1676
    %v1709 = vunpack.c.h.b16 %v1676
    %v1710 = vunpack.c.l.b16 %v1677
    %v1711 = vunpack.c.h.b16 %v1677
    %v1712 = vunpack.c.l.b16 %v1678
    %v1713 = vunpack.c.h.b16 %v1678
    %v1714 = vunpack.c.l.b16 %v1679
    %v1715 = vunpack.c.h.b16 %v1679
    %v1716 = vunpack.c.l.b16 %v1680
    %v1717 = vunpack.c.h.b16 %v1680
    %v1718 = vunpack.c.l.b16 %v1681
    %v1719 = vunpack.c.h.b16 %v1681
    %v1720 = vunpack.c.l.b16 %v1682
    %v1721 = vunpack.c.h.b16 %v1682
    %v1722 = vunpack.c.l.b16 %v1683
    %v1723 = vunpack.c.h.b16 %v1683
    %v1724 = vunpack.c.l.b16 %v1684
    %v1725 = vunpack.c.h.b16 %v1684
    %v1726 = vunpack.c.l.b16 %v1685
    %v1727 = vunpack.c.h.b16 %v1685
    %v1728 = vunpack.c.l.b16 %v1686
    %v1729 = vunpack.c.h.b16 %v1686
    %v1730 = vunpack.c.l.b16 %v1687
    %v1731 = vunpack.c.h.b16 %v1687
    %v1732 = vunpack.c.l.b16 %v1688
    %v1733 = vunpack.c.h.b16 %v1688
    %v1734 = vunpack.c.l.b16 %v1689
    %v1735 = vunpack.c.h.b16 %v1689
    %v1736 = vunpack.c.l.b16 %v1690
    %v1737 = vunpack.c.h.b16 %v1690
    %v1738 = vunpack.c.l.b16 %v1691
    %v1739 = vunpack.c.h.b16 %v1691
    %v1740 = vpack.c.b16 %v1708, %v1708
    %v1741 = vpack.c.b16 %v1709, %v1709
    %v1742 = vpack.c.b16 %v1710, %v1710
    %v1743 = vpack.c.b16 %v1711, %v1711
    %v1744 = vpack.c.b16 %v1712, %v1712
    %v1745 = vpack.c.b16 %v1713, %v1713
    %v1746 = vpack.c.b16 %v1714, %v1714
    %v1747 = vpack.c.b16 %v1715, %v1715
    %v1748 = vpack.c.b16 %v1716, %v1716
    %v1749 = vpack.c.b16 %v1717, %v1717
    %v1750 = vpack.c.b16 %v1718, %v1718
    %v1751 = vpack.c.b16 %v1719, %v1719
    %v1752 = vpack.c.b16 %v1720, %v1720
    %v1753 = vpack.c.b16 %v1721, %v1721
    %v1754 = vpack.c.b16 %v1722, %v1722
    %v1755 = vpack.c.b16 %v1723, %v1723
    %v1756 = vpack.c.b16 %v1724, %v1724
    %v1757 = vpack.c.b16 %v1725, %v1725
    %v1758 = vpack.c.b16 %v1726, %v1726
    %v1759 = vpack.c.b16 %v1727, %v1727
    %v1760 = vpack.c.b16 %v1728, %v1728
    %v1761 = vpack.c.b16 %v1729, %v1729
    %v1762 = vpack.c.b16 %v1730, %v1730
    %v1763 = vpack.c.b16 %v1731, %v1731
    %v1764 = vpack.c.b16 %v1732, %v1732
    %v1765 = vpack.c.b16 %v1733, %v1733
    %v1766 = vpack.c.b16 %v1734, %v1734
    %v1767 = vpack.c.b16 %v1735, %v1735
    %v1768 = vpack.c.b16 %v1736, %v1736
    %v1769 = vpack.c.b16 %v1737, %v1737
    %v1770 = vpack.c.b16 %v1738, %v1738
    %v1771 = vpack.c.b16 %v1739, %v1739
    %1804 = vst.msk [vmem:[%s8] sm:$0xf] %vm1483, %v1740
    %1805 = vst.msk [vmem:[%s8 + $0x4] sm:$0xf] %vm1483, %v1741
    %1806 = vst.msk [vmem:[%s8 + $0x8] sm:$0xf] %vm1483, %v1742
    %1807 = vst.msk [vmem:[%s8 + $0xc] sm:$0xf] %vm1483, %v1743
    %1808 = vst.msk [vmem:[%s8 + $0x10] sm:$0xf] %vm1483, %v1744
    %1809 = vst.msk [vmem:[%s8 + $0x14] sm:$0xf] %vm1483, %v1745
    %1810 = vst.msk [vmem:[%s8 + $0x18] sm:$0xf] %vm1483, %v1746
    %1811 = vst.msk [vmem:[%s8 + $0x1c] sm:$0xf] %vm1483, %v1747
    %1812 = vst.msk [vmem:[%s8 + $0x20] sm:$0xf] %vm1483, %v1748
    %1813 = vst.msk [vmem:[%s8 + $0x24] sm:$0xf] %vm1483, %v1749
    %1814 = vst.msk [vmem:[%s8 + $0x28] sm:$0xf] %vm1483, %v1750
    %1815 = vst.msk [vmem:[%s8 + $0x2c] sm:$0xf] %vm1483, %v1751
    %1816 = vst.msk [vmem:[%s8 + $0x30] sm:$0xf] %vm1483, %v1752
    %1817 = vst.msk [vmem:[%s8 + $0x34] sm:$0xf] %vm1483, %v1753
    %1818 = vst.msk [vmem:[%s8 + $0x38] sm:$0xf] %vm1483, %v1754
    %1819 = vst.msk [vmem:[%s8 + $0x3c] sm:$0xf] %vm1483, %v1755
    %1820 = vst.msk [vmem:[%s8 + $0x40] sm:$0xf] %vm1483, %v1756
    %1821 = vst.msk [vmem:[%s8 + $0x44] sm:$0xf] %vm1483, %v1757
    %1822 = vst.msk [vmem:[%s8 + $0x48] sm:$0xf] %vm1483, %v1758
    %1823 = vst.msk [vmem:[%s8 + $0x4c] sm:$0xf] %vm1483, %v1759
    %1824 = vst.msk [vmem:[%s8 + $0x50] sm:$0xf] %vm1483, %v1760
    %1825 = vst.msk [vmem:[%s8 + $0x54] sm:$0xf] %vm1483, %v1761
    %1826 = vst.msk [vmem:[%s8 + $0x58] sm:$0xf] %vm1483, %v1762
    %1827 = vst.msk [vmem:[%s8 + $0x5c] sm:$0xf] %vm1483, %v1763
    %1828 = vst.msk [vmem:[%s8 + $0x60] sm:$0xf] %vm1483, %v1764
    %1829 = vst.msk [vmem:[%s8 + $0x64] sm:$0xf] %vm1483, %v1765
    %1830 = vst.msk [vmem:[%s8 + $0x68] sm:$0xf] %vm1483, %v1766
    %1831 = vst.msk [vmem:[%s8 + $0x6c] sm:$0xf] %vm1483, %v1767
    %1832 = vst.msk [vmem:[%s8 + $0x70] sm:$0xf] %vm1483, %v1768
    %1833 = vst.msk [vmem:[%s8 + $0x74] sm:$0xf] %vm1483, %v1769
    %1834 = vst.msk [vmem:[%s8 + $0x78] sm:$0xf] %vm1483, %v1770
    %1835 = vst.msk [vmem:[%s8 + $0x7c] sm:$0xf] %vm1483, %v1771
    %v1836 = vld [vmem:[%s5] sm:$0x1]
    %v1838 = vlaneseq
    %v1839 = vshrl.u32 %v1838, 7
    %v1840 = vsub.s32 0, %v1839
    %v1841 = vrot.slane %v1836, %v1840
    %1842 = vrot.lane.b32.xlu0 %v1841, 32
    %v1843 = vpop.permute.xlu0 %1842
    %v1845 = vsel %vm1322, %v1836, %v1843
    %vm1846 = vcmask 516096
    %1847 = vst.msk [vmem:[#allocation2] sm:$0x1] %vm1846, %v1845
    %v1848 = vld [vmem:[%s6] sm:$0x1]
    %v1850 = vlaneseq
    %v1851 = vshrl.u32 %v1850, 7
    %v1852 = vsub.s32 0, %v1851
    %v1853 = vrot.slane %v1848, %v1852
    %1854 = vrot.lane.b32.xlu0 %v1853, 32
    %v1855 = vpop.permute.xlu0 %1854
    %v1857 = vsel %vm1322, %v1848, %v1855
    %1858 = vst.msk [vmem:[#allocation4] sm:$0x1] %vm1846, %v1857
    %v1859 = vld [vmem:[%s4] sm:$0xff]
    %v1860 = vld [vmem:[%s4 + $0x8] sm:$0xff]
    %v1861 = vld [vmem:[%s4 + $0x10] sm:$0xff]
    %v1862 = vld [vmem:[%s4 + $0x18] sm:$0xff]
    %v1863 = vsel %vm1322, %v1859, 0.0
    %1864 = vadd.xlane.f32.xlu0 %v1863
    %v1865 = vpop.xlane.xlu0 %1864
    %v1866 = vsel %vm1322, %v1860, 0.0
    %1867 = vadd.xlane.f32.xlu0 %v1866
    %v1868 = vpop.xlane.xlu0 %1867
    %v1869 = vsel %vm1322, %v1861, 0.0
    %1870 = vadd.xlane.f32.xlu0 %v1869
    %v1871 = vpop.xlane.xlu0 %1870
    %v1872 = vsel %vm1322, %v1862, 0.0
    %1873 = vadd.xlane.f32.xlu0 %v1872
    %v1874 = vpop.xlane.xlu0 %1873
    %vm1875 = vcmask 7168
    %v1876 = vsel %vm1875, 0.03125, %v1865
    %v1877 = vsel %vm1875, 0.03125, %v1868
    %v1878 = vsel %vm1875, 0.03125, %v1871
    %v1879 = vsel %vm1875, 0.03125, %v1874
    %vm1880 = vcmask 15360
    %v1881 = vsel %vm1880, %v1876, 0.0
    %v1882 = vsel %vm1880, %v1877, 0.0
    %v1883 = vsel %vm1880, %v1878, 0.0
    %v1884 = vsel %vm1880, %v1879, 0.0
    %vm1885 = vcmask 23552
    %v1886 = vsel %vm1885, %v1881, 0.0
    %v1887 = vsel %vm1885, %v1882, 0.0
    %v1888 = vsel %vm1885, %v1883, 0.0
    %v1889 = vsel %vm1885, %v1884, 0.0
    %v1890 = vsel %vm1880, 0.0, %v1865
    %v1891 = vsel %vm1880, 0.0, %v1868
    %v1892 = vsel %vm1880, 0.0, %v1871
    %v1893 = vsel %vm1880, 0.0, %v1874
    %v1894 = vsel %vm1885, %v1890, 0.0
    %v1895 = vsel %vm1885, %v1891, 0.0
    %v1896 = vsel %vm1885, %v1892, 0.0
    %v1897 = vsel %vm1885, %v1893, 0.0
    %vm1898 = vcmask 31744
    %1899 = vst.msk [vmem:[%s11] sm:$0xff] %vm1898, %v1886
    %1900 = vst.msk [vmem:[%s11 + $0x8] sm:$0xff] %vm1898, %v1887
    %1901 = vst.msk [vmem:[%s11 + $0x10] sm:$0xff] %vm1898, %v1888
    %1902 = vst.msk [vmem:[%s11 + $0x18] sm:$0xff] %vm1898, %v1889
    %1903 = vst.msk [vmem:[%s11 + $0x20] sm:$0xff] %vm1898, %v1894
    %1904 = vst.msk [vmem:[%s11 + $0x28] sm:$0xff] %vm1898, %v1895
    %1905 = vst.msk [vmem:[%s11 + $0x30] sm:$0xff] %vm1898, %v1896
    %1906 = vst.msk [vmem:[%s11 + $0x38] sm:$0xff] %vm1898, %v1897
    // Predicated region
    $region30: #{tpu_custom_call.1} parent=1 // pred_check
      _
    $region31: #{tpu_custom_call.1} parent=1 // pred_check_branch
      %1908 = sbr.rel (0) target = $region33
    $region32: #{tpu_custom_call.1} parent=1 // pred_region
      _
    $region33: #{tpu_custom_call.1} parent=1 // pred_fallthru
      _
    // Predicated region
    $region34: #{tpu_custom_call.1} parent=1 // pred_check
      _
    $region35: #{tpu_custom_call.1} parent=1 // pred_check_branch
      %1910 = sbr.rel (0) target = $region37
    $region36: #{tpu_custom_call.1} parent=1 // pred_region
      _
    $region37: #{tpu_custom_call.1} parent=1 // pred_fallthru
      _
    // Predicated region
    $region38: #{tpu_custom_call.1} parent=1 // pred_check
      _
    $region39: #{tpu_custom_call.1} parent=1 // pred_check_branch
      %1912 = sbr.rel (0) target = $region41
    $region40: #{tpu_custom_call.1} parent=1 // pred_region
      %s1914 = ssub.s32 16, 16
      %1915 = vsyncadd [#allocation3], %s1914
      %s1917 = sshll.u32 [#allocation2], 4
      %s1918 = int_to_ptr.vmem [resolvable:$true] %s1917
      %1920 = dma.vmem_to_hbm [thread:$0]  %s1918, 16, %s9, [#allocation3]
    $region41: #{tpu_custom_call.1} parent=1 // pred_fallthru
      _
    // Predicated region
    $region42: #{tpu_custom_call.1} parent=1 // pred_check
      _
    $region43: #{tpu_custom_call.1} parent=1 // pred_check_branch
      %1922 = sbr.rel (0) target = $region45
    $region44: #{tpu_custom_call.1} parent=1 // pred_region
      %s1924 = ssub.s32 16, 16
      %1925 = vsyncadd [#allocation5], %s1924
      %s1927 = sshll.u32 [#allocation4], 4
      %s1928 = int_to_ptr.vmem [resolvable:$true] %s1927
      %1930 = dma.vmem_to_hbm [thread:$0]  %s1928, 16, %s10, [#allocation5]
    $region45: #{tpu_custom_call.1} parent=1 // pred_fallthru
      _
    // Predicated region
    $region46: #{tpu_custom_call.1} parent=1 // pred_check
      _
    $region47: #{tpu_custom_call.1} parent=1 // pred_check_branch
      %1932 = sbr.rel (0) target = $region49
    $region48: #{tpu_custom_call.1} parent=1 // pred_region
      _
    $region49: #{tpu_custom_call.1} parent=1 // pred_fallthru
      _
    // Predicated region
    $region50: #{tpu_custom_call.1} parent=1 // pred_check
      _
    $region51: #{tpu_custom_call.1} parent=1 // pred_check_branch
      %1934 = sbr.rel (0) target = $region53
    $region52: #{tpu_custom_call.1} parent=1 // pred_region
      _
    $region53: #{tpu_custom_call.1} parent=1 // pred_fallthru
      _
    // Predicated region
    $region54: #{tpu_custom_call.1} parent=1 // pred_check
      _
    $region55: #{tpu_custom_call.1} parent=1 // pred_check_branch
      %1936 = sbr.rel (0) target = $region57
    $region56: #{tpu_custom_call.1} parent=1 // pred_region
      _
    $region57: #{tpu_custom_call.1} parent=1 // pred_fallthru
      _
    // Predicated region
    $region58: #{tpu_custom_call.1} parent=1 // pred_check
      _
    $region59: #{tpu_custom_call.1} parent=1 // pred_check_branch
      %1938 = sbr.rel (0) target = $region61
    $region60: #{tpu_custom_call.1} parent=1 // pred_region
      %1939 = dma.done [#allocation3], 16
    $region61: #{tpu_custom_call.1} parent=1 // pred_fallthru
      _
    // Predicated region
    $region62: #{tpu_custom_call.1} parent=1 // pred_check
      _
    $region63: #{tpu_custom_call.1} parent=1 // pred_check_branch
      %1941 = sbr.rel (0) target = $region65
    $region64: #{tpu_custom_call.1} parent=1 // pred_region
      %1942 = dma.done [#allocation5], 16
    $region65: #{tpu_custom_call.1} parent=1 // pred_fallthru
      _
    // Predicated region
    $region66: #{tpu_custom_call.1} parent=1 // pred_check
      _
    $region67: #{tpu_custom_call.1} parent=1 // pred_check_branch
      %1944 = sbr.rel (0) target = $region69
    $region68: #{tpu_custom_call.1} parent=1 // pred_region
      _
    $region69: #{tpu_custom_call.1} parent=1 // pred_fallthru
      _
    %1945 = vsyncpa [#allocation3], 1
    %1946 = vsyncpa [#allocation5], 1

</llo_original>
